<compile_context>
chip_gen: v7x
topology: tpu7x:2x2x1
jax: 0.10.0
libtpu: 0.0.40
codegen_flags: <defaults>
</compile_context>

<pallas_src>
import functools
import numpy as np
import jax
import jax.numpy as jnp
from jax.experimental import pallas as pl
from jax.experimental.pallas import tpu as pltpu


def _silu(a):
    return a * jax.nn.sigmoid(a)


def _instance_norm(a, eps):
    # a: (C, HW); biased variance over spatial dim, matching nn.InstanceNorm2d
    # (affine=False, track_running_stats=False, eps=1e-5). Single-pass stats.
    mean = jnp.mean(a, axis=1, keepdims=True)
    ex2 = jnp.mean(a * a, axis=1, keepdims=True)
    var = jnp.maximum(ex2 - mean * mean, 0.0)
    return (a - mean) * jax.lax.rsqrt(var + eps)


def resnet_block_kernel(x_ref, tcol_ref, style_ref, mask_ref,
                        w1_ref, b1_ref,
                        w2_ref, b2_ref,
                        wres_ref, bres_ref,
                        out_ref, *, H, W, C_out, groups, eps):
    x = x_ref[0]            # (C_in, HW)   f32
    t_col = tcol_ref[0]     # (C_in, 1)    f32  (Dense_time output, precomputed)
    style = style_ref[0]    # (2*C_out, 1) f32  (style linear output, precomputed)
    masks = mask_ref[...]   # (9, HW)      bf16 0/1 boundary masks per tap

    # tap k = (dy+1)*3 + (dx+1); lane shift of the flattened (H*W) image
    shifts = [dy * W + dx for dy in (-1, 0, 1) for dx in (-1, 0, 1)]

    def conv3x3(a_bf, w_ref, b_col):
        # a_bf: (C, HW) bf16; w_ref: (g, C_out/g, 9*C/g) bf16 -> (C_out, HW) f32
        C = a_bf.shape[0]
        Cg = C // groups
        # 9 shifted + boundary-masked full-channel views, shared by all groups.
        views = []
        for k, s in enumerate(shifts):
            if s == 0:                       # center tap: no shift, always valid
                views.append(a_bf)
            else:
                views.append(jnp.roll(a_bf, -s, axis=1) * masks[k:k + 1, :])
        outs = []
        for gi in range(groups):
            lo = gi * Cg
            slab = jnp.concatenate([v[lo:lo + Cg, :] for v in views], axis=0)
            outs.append(jnp.dot(w_ref[gi], slab,
                                preferred_element_type=jnp.float32))
        return jnp.concatenate(outs, axis=0) + b_col

    # block1: InstanceNorm -> + time -> SiLU -> Dropout(p=0) -> grouped 3x3 conv
    a1 = _silu(_instance_norm(x, eps) + t_col)
    h = conv3x3(a1.astype(jnp.bfloat16), w1_ref, b1_ref[...])

    # AdaptiveLayer: h = (gamma + 1) * h + beta
    gamma = style[:C_out, :]
    beta = style[C_out:, :]
    h = (gamma + 1.0) * h + beta

    # block2: InstanceNorm -> SiLU -> Dropout(p=0) -> grouped 3x3 conv
    a2 = _silu(_instance_norm(h, eps))
    h2 = conv3x3(a2.astype(jnp.bfloat16), w2_ref, b2_ref[...])

    # residual: grouped 1x1 conv on the ORIGINAL x
    x_bf = x.astype(jnp.bfloat16)
    Cig = x.shape[0] // groups
    res_parts = [jnp.dot(wres_ref[gi], x_bf[gi * Cig:(gi + 1) * Cig, :],
                         preferred_element_type=jnp.float32)
                 for gi in range(groups)]
    res = jnp.concatenate(res_parts, axis=0) + bres_ref[...]

    out_ref[0] = (h2 + res).astype(out_ref.dtype)


def _prep_grouped_3x3(w, groups):
    # (C_out, C_in//g, 3, 3) -> (g, C_out//g, 9*C_in//g) bf16, tap-major layout
    w = jnp.asarray(w, jnp.float32)
    C_o, C_ig, kh, kw = w.shape
    C_og = C_o // groups
    w = w.reshape(groups, C_og, C_ig, kh * kw)
    w = jnp.transpose(w, (0, 1, 3, 2)).reshape(groups, C_og, kh * kw * C_ig)
    return w.astype(jnp.bfloat16)


def _prep_grouped_1x1(w, groups):
    # (C_out, C_in//g, 1, 1) -> (g, C_out//g, C_in//g) bf16
    w = jnp.asarray(w, jnp.float32)[:, :, 0, 0]
    C_o, C_ig = w.shape
    return w.reshape(groups, C_o // groups, C_ig).astype(jnp.bfloat16)


def _boundary_masks(H, W):
    # (9, H*W) 0/1 masks: tap k valid iff (row+dy, col+dx) is inside the image.
    pos = np.arange(H * W)
    row, col = pos // W, pos % W
    m = np.empty((9, H * W), np.float32)
    k = 0
    for dy in (-1, 0, 1):
        for dx in (-1, 0, 1):
            m[k] = (((row + dy) >= 0) & ((row + dy) < H) &
                    ((col + dx) >= 0) & ((col + dx) < W)).astype(np.float32)
            k += 1
    return jnp.asarray(m, jnp.bfloat16)


def resnet_block_forward(x, time_emb, z_emb, params, *, temp_nc, eps=1e-5):
    B, C_in, H, W = x.shape
    C_out = params["w1"].shape[0]
    HW = H * W
    g = temp_nc

    x_flat = x.reshape(B, C_in, HW).astype(jnp.float32)

    # Tiny N=1 linears: batched XLA GEMMs in the wrapper (not worth a kernel).
    t_col = (time_emb.astype(jnp.float32) @ params["wt"].astype(jnp.float32).T
             + params["bt"].astype(jnp.float32)).reshape(B, C_in, 1)
    style = (z_emb.astype(jnp.float32) @ params["wz"].astype(jnp.float32).T
             + params["bz"].astype(jnp.float32)).reshape(B, 2 * C_out, 1)

    masks = _boundary_masks(H, W)                  # (9, HW) bf16
    w1g = _prep_grouped_3x3(params["w1"], g)       # (g, C_out/g, 9*C_in/g)
    w2g = _prep_grouped_3x3(params["w2"], g)       # (g, C_out/g, 9*C_out/g)
    wresg = _prep_grouped_1x1(params["wres"], g)   # (g, C_out/g, C_in/g)

    b1 = params["b1"].reshape(C_out, 1).astype(jnp.float32)
    b2 = params["b2"].reshape(C_out, 1).astype(jnp.float32)
    bres = params["bres"].reshape(C_out, 1).astype(jnp.float32)

    # Explicit scoped-VMEM budget (double-buffered blocks + in-kernel temps).
    est = (2 * 4 * HW * (C_in + C_out)                      # x / out blocks x2
           + 2 * 2 * (w1g.size + w2g.size + wresg.size)     # bf16 weights x2
           + 4 * HW * (2 * C_in + 6 * C_out)                # f32 temporaries
           + 2 * HW * (9 * max(C_in, C_out) + 9))           # bf16 views + masks
    vmem_limit = int(min(max(est + (8 << 20), 32 << 20), 48 << 20))

    def const_spec(shape):
        n = len(shape)
        return pl.BlockSpec(shape, lambda b, _n=n: (0,) * _n)

    kernel = functools.partial(resnet_block_kernel,
                               H=H, W=W, C_out=C_out, groups=g, eps=eps)

    out_flat = pl.pallas_call(
        kernel,
        out_shape=jax.ShapeDtypeStruct((B, C_out, HW), jnp.float32),
        grid=(B,),
        in_specs=[
            pl.BlockSpec((1, C_in, HW), lambda b: (b, 0, 0)),
            pl.BlockSpec((1, C_in, 1), lambda b: (b, 0, 0)),
            pl.BlockSpec((1, 2 * C_out, 1), lambda b: (b, 0, 0)),
            const_spec(masks.shape),
            const_spec(w1g.shape), const_spec(b1.shape),
            const_spec(w2g.shape), const_spec(b2.shape),
            const_spec(wresg.shape), const_spec(bres.shape),
        ],
        out_specs=pl.BlockSpec((1, C_out, HW), lambda b: (b, 0, 0)),
        compiler_params=pltpu.CompilerParams(
            dimension_semantics=("parallel",),
            vmem_limit_bytes=vmem_limit),
    )(x_flat, t_col, style, masks, w1g, b1, w2g, b2, wresg, bres)

    return out_flat.reshape(B, C_out, H, W)


def reference_forward(x, time_emb, z_emb, p, *, temp_nc, eps=1e-5):
    # Pure-JAX f32 replica of the PyTorch forward, used only for validation.
    C_out = p["w1"].shape[0]

    def inorm(a):
        m = a.mean(axis=(2, 3), keepdims=True)
        v = ((a - m) ** 2).mean(axis=(2, 3), keepdims=True)
        return (a - m) / jnp.sqrt(v + eps)

    def silu(a):
        return a * jax.nn.sigmoid(a)

    def conv(a, w, b, pad):
        out = jax.lax.conv_general_dilated(
            a, w, window_strides=(1, 1), padding=[(pad, pad), (pad, pad)],
            dimension_numbers=("NCHW", "OIHW", "NCHW"),
            feature_group_count=temp_nc)
        return out + b[None, :, None, None]

    t = time_emb @ p["wt"].T + p["bt"]
    h = silu(inorm(x) + t[:, :, None, None])
    h = conv(h, p["w1"], p["b1"], 1)
    style = z_emb @ p["wz"].T + p["bz"]
    gamma, beta = style[:, :C_out], style[:, C_out:]
    h = (gamma[:, :, None, None] + 1.0) * h + beta[:, :, None, None]
    h = conv(silu(inorm(h)), p["w2"], p["b2"], 1)
    res = conv(x, p["wres"], p["bres"], 0)
    return h + res


if __name__ == "__main__":
    # Small shapes consistent with the module: grouped convs (groups=temp_nc=3)
    # require channel counts divisible by 3.
    B, C_in, C_out, H, W = 2, 6, 12, 16, 16
    T, Z, temp_nc = 8, 8, 3

    key = jax.random.PRNGKey(0)
    ks = jax.random.split(key, 11)
    x = jax.random.normal(ks[0], (B, C_in, H, W), jnp.float32)
    time_emb = jax.random.normal(ks[1], (B, T), jnp.float32)
    z_emb = jax.random.normal(ks[2], (B, Z), jnp.float32)

    s = 0.1
    params = {
        # Dense_time: Linear(time_emb_dim, dim), bias zero-initialised (per __init__)
        "wt": s * jax.random.normal(ks[3], (C_in, T), jnp.float32),
        "bt": jnp.zeros((C_in,), jnp.float32),
        # block1.proj: Conv2d(dim, dim_out, 3, padding=1, groups=temp_nc)
        "w1": s * jax.random.normal(ks[4], (C_out, C_in // temp_nc, 3, 3), jnp.float32),
        "b1": s * jax.random.normal(ks[5], (C_out,), jnp.float32),
        # adaptive.style_net: Linear(z_emb_dim, 2*dim_out), bias = [1]*dim_out + [0]*dim_out
        "wz": s * jax.random.normal(ks[6], (2 * C_out, Z), jnp.float32),
        "bz": jnp.concatenate([jnp.ones((C_out,)), jnp.zeros((C_out,))]).astype(jnp.float32),
        # block2.proj: Conv2d(dim_out, dim_out, 3, padding=1, groups=temp_nc)
        "w2": s * jax.random.normal(ks[7], (C_out, C_out // temp_nc, 3, 3), jnp.float32),
        "b2": s * jax.random.normal(ks[8], (C_out,), jnp.float32),
        # res_conv: Conv2d(dim, dim_out, 1, groups=temp_nc)  (dim != dim_out)
        "wres": s * jax.random.normal(ks[9], (C_out, C_in // temp_nc, 1, 1), jnp.float32),
        "bres": s * jax.random.normal(ks[10], (C_out,), jnp.float32),
    }

    out = resnet_block_forward(x, time_emb, z_emb, params, temp_nc=temp_nc)
    out = jax.block_until_ready(out)

    ref = jax.block_until_ready(
        reference_forward(x, time_emb, z_emb, params, temp_nc=temp_nc))
    assert out.shape == (B, C_out, H, W)
    # bf16 matmul operands (f32 accumulation) vs pure-f32 reference -> allow a
    # correspondingly loose (but still structure-detecting) tolerance.
    if not np.allclose(np.asarray(out), np.asarray(ref), rtol=2e-2, atol=3e-2):
        raise AssertionError("Pallas output mismatch vs JAX reference")
    print("KERNEL_OK")
</pallas_src>

<mosaic_0001>
module attributes {stable_mosaic.version = 11 : i64} {
  func.func @resnet_block_kernel(%arg0: i32, %arg1: memref<1x6x256xf32, #tpu.memory_space<vmem>>, %arg2: memref<1x6x1xf32, #tpu.memory_space<vmem>>, %arg3: memref<1x24x1xf32, #tpu.memory_space<vmem>>, %arg4: memref<9x256xbf16, #tpu.memory_space<vmem>>, %arg5: memref<3x4x18xbf16, #tpu.memory_space<vmem>>, %arg6: memref<12x1xf32, #tpu.memory_space<vmem>>, %arg7: memref<3x4x36xbf16, #tpu.memory_space<vmem>>, %arg8: memref<12x1xf32, #tpu.memory_space<vmem>>, %arg9: memref<3x4x2xbf16, #tpu.memory_space<vmem>>, %arg10: memref<12x1xf32, #tpu.memory_space<vmem>>, %arg11: memref<1x12x256xf32, #tpu.memory_space<vmem>>) attributes {dimension_semantics = [#tpu.dimension_semantics<parallel>], iteration_bounds = array<i64: 2>, scalar_prefetch = 0 : i64, scratch_operands = 0 : i64, tpu.core_type = #tpu.core_type<tc>, window_params = [{transform_indices = @transform_0, window_bounds = array<i64: 1, 6, 256>}, {transform_indices = @transform_1, window_bounds = array<i64: 1, 6, 1>}, {transform_indices = @transform_2, window_bounds = array<i64: 1, 24, 1>}, {pipeline_mode = #tpu.pipeline_mode<synchronous>, transform_indices = @transform_3, window_bounds = array<i64: 9, 256>}, {pipeline_mode = #tpu.pipeline_mode<synchronous>, transform_indices = @transform_4, window_bounds = array<i64: 3, 4, 18>}, {pipeline_mode = #tpu.pipeline_mode<synchronous>, transform_indices = @transform_5, window_bounds = array<i64: 12, 1>}, {pipeline_mode = #tpu.pipeline_mode<synchronous>, transform_indices = @transform_6, window_bounds = array<i64: 3, 4, 36>}, {pipeline_mode = #tpu.pipeline_mode<synchronous>, transform_indices = @transform_7, window_bounds = array<i64: 12, 1>}, {pipeline_mode = #tpu.pipeline_mode<synchronous>, transform_indices = @transform_8, window_bounds = array<i64: 3, 4, 2>}, {pipeline_mode = #tpu.pipeline_mode<synchronous>, transform_indices = @transform_9, window_bounds = array<i64: 12, 1>}, {transform_indices = @transform_10, window_bounds = array<i64: 1, 12, 256>}]} {
    %c0 = arith.constant 0 : index
    %c0_0 = arith.constant 0 : index
    %c0_1 = arith.constant 0 : index
    %0 = vector.load %arg1[%c0, %c0_0, %c0_1] : memref<1x6x256xf32, #tpu.memory_space<vmem>>, vector<1x6x256xf32>
    %1 = vector.shape_cast %0 : vector<1x6x256xf32> to vector<6x256xf32>
    %c0_2 = arith.constant 0 : index
    %c0_3 = arith.constant 0 : index
    %c0_4 = arith.constant 0 : index
    %2 = vector.load %arg2[%c0_2, %c0_3, %c0_4] : memref<1x6x1xf32, #tpu.memory_space<vmem>>, vector<1x6x1xf32>
    %3 = vector.shape_cast %2 : vector<1x6x1xf32> to vector<6x1xf32>
    %c0_5 = arith.constant 0 : index
    %c0_6 = arith.constant 0 : index
    %c0_7 = arith.constant 0 : index
    %4 = vector.load %arg3[%c0_5, %c0_6, %c0_7] : memref<1x24x1xf32, #tpu.memory_space<vmem>>, vector<1x24x1xf32>
    %5 = vector.shape_cast %4 : vector<1x24x1xf32> to vector<24x1xf32>
    %c0_8 = arith.constant 0 : index
    %c0_9 = arith.constant 0 : index
    %6 = vector.load %arg4[%c0_8, %c0_9] : memref<9x256xbf16, #tpu.memory_space<vmem>>, vector<9x256xbf16>
    %cst = arith.constant dense<0.000000e+00> : vector<6xf32>
    %7 = vector.multi_reduction <add>, %1, %cst [1] : vector<6x256xf32> to vector<6xf32>
    %8 = vector.shape_cast %7 : vector<6xf32> to vector<6x1xf32>
    %cst_10 = arith.constant 2.560000e+02 : f32
    %9 = vector.broadcast %cst_10 : f32 to vector<6x1xf32>
    %10 = arith.divf %8, %9 : vector<6x1xf32>
    %11 = arith.mulf %1, %1 : vector<6x256xf32>
    %cst_11 = arith.constant dense<0.000000e+00> : vector<6xf32>
    %12 = vector.multi_reduction <add>, %11, %cst_11 [1] : vector<6x256xf32> to vector<6xf32>
    %13 = vector.shape_cast %12 : vector<6xf32> to vector<6x1xf32>
    %cst_12 = arith.constant 2.560000e+02 : f32
    %14 = vector.broadcast %cst_12 : f32 to vector<6x1xf32>
    %15 = arith.divf %13, %14 : vector<6x1xf32>
    %16 = arith.mulf %10, %10 : vector<6x1xf32>
    %17 = arith.subf %15, %16 : vector<6x1xf32>
    %cst_13 = arith.constant 0.000000e+00 : f32
    %18 = vector.broadcast %cst_13 : f32 to vector<6x1xf32>
    %19 = arith.maximumf %17, %18 : vector<6x1xf32>
    %20 = vector.broadcast %10 : vector<6x1xf32> to vector<6x256xf32>
    %21 = arith.subf %1, %20 : vector<6x256xf32>
    %cst_14 = arith.constant 9.99999974E-6 : f32
    %22 = vector.broadcast %cst_14 : f32 to vector<6x1xf32>
    %23 = arith.addf %19, %22 : vector<6x1xf32>
    %24 = math.rsqrt %23 : vector<6x1xf32>
    %25 = vector.broadcast %24 : vector<6x1xf32> to vector<6x256xf32>
    %26 = arith.mulf %21, %25 : vector<6x256xf32>
    %27 = vector.broadcast %3 : vector<6x1xf32> to vector<6x256xf32>
    %28 = arith.addf %26, %27 : vector<6x256xf32>
    %29 = arith.negf %28 : vector<6x256xf32>
    %30 = math.exp %29 : vector<6x256xf32>
    %cst_15 = arith.constant 1.000000e+00 : f32
    %31 = vector.broadcast %cst_15 : f32 to vector<6x256xf32>
    %32 = arith.addf %31, %30 : vector<6x256xf32>
    %33 = arith.divf %31, %32 : vector<6x256xf32>
    %34 = arith.mulf %28, %33 : vector<6x256xf32>
    %35 = arith.truncf %34 : vector<6x256xf32> to vector<6x256xbf16>
    %c0_16 = arith.constant 0 : index
    %c0_17 = arith.constant 0 : index
    %36 = vector.load %arg6[%c0_16, %c0_17] : memref<12x1xf32, #tpu.memory_space<vmem>>, vector<12x1xf32>
    %37 = vector.extract_strided_slice %35 {offsets = [0, 239], sizes = [6, 17], strides = [1, 1]} : vector<6x256xbf16> to vector<6x17xbf16>
    %38 = vector.extract_strided_slice %35 {offsets = [0, 0], sizes = [6, 239], strides = [1, 1]} : vector<6x256xbf16> to vector<6x239xbf16>
    %39 = tpu.concatenate %37, %38 in 1 : vector<6x17xbf16>, vector<6x239xbf16> -> vector<6x256xbf16>
    %40 = vector.extract_strided_slice %6 {offsets = [0, 0], sizes = [1, 256], strides = [1, 1]} : vector<9x256xbf16> to vector<1x256xbf16>
    %41 = vector.broadcast %40 : vector<1x256xbf16> to vector<6x256xbf16>
    %42 = arith.mulf %39, %41 : vector<6x256xbf16>
    %43 = vector.extract_strided_slice %35 {offsets = [0, 240], sizes = [6, 16], strides = [1, 1]} : vector<6x256xbf16> to vector<6x16xbf16>
    %44 = vector.extract_strided_slice %35 {offsets = [0, 0], sizes = [6, 240], strides = [1, 1]} : vector<6x256xbf16> to vector<6x240xbf16>
    %45 = tpu.concatenate %43, %44 in 1 : vector<6x16xbf16>, vector<6x240xbf16> -> vector<6x256xbf16>
    %46 = vector.extract_strided_slice %6 {offsets = [1, 0], sizes = [1, 256], strides = [1, 1]} : vector<9x256xbf16> to vector<1x256xbf16>
    %47 = vector.broadcast %46 : vector<1x256xbf16> to vector<6x256xbf16>
    %48 = arith.mulf %45, %47 : vector<6x256xbf16>
    %49 = vector.extract_strided_slice %35 {offsets = [0, 241], sizes = [6, 15], strides = [1, 1]} : vector<6x256xbf16> to vector<6x15xbf16>
    %50 = vector.extract_strided_slice %35 {offsets = [0, 0], sizes = [6, 241], strides = [1, 1]} : vector<6x256xbf16> to vector<6x241xbf16>
    %51 = tpu.concatenate %49, %50 in 1 : vector<6x15xbf16>, vector<6x241xbf16> -> vector<6x256xbf16>
    %52 = vector.extract_strided_slice %6 {offsets = [2, 0], sizes = [1, 256], strides = [1, 1]} : vector<9x256xbf16> to vector<1x256xbf16>
    %53 = vector.broadcast %52 : vector<1x256xbf16> to vector<6x256xbf16>
    %54 = arith.mulf %51, %53 : vector<6x256xbf16>
    %55 = vector.extract_strided_slice %35 {offsets = [0, 255], sizes = [6, 1], strides = [1, 1]} : vector<6x256xbf16> to vector<6x1xbf16>
    %56 = vector.extract_strided_slice %35 {offsets = [0, 0], sizes = [6, 255], strides = [1, 1]} : vector<6x256xbf16> to vector<6x255xbf16>
    %57 = tpu.concatenate %55, %56 in 1 : vector<6x1xbf16>, vector<6x255xbf16> -> vector<6x256xbf16>
    %58 = vector.extract_strided_slice %6 {offsets = [3, 0], sizes = [1, 256], strides = [1, 1]} : vector<9x256xbf16> to vector<1x256xbf16>
    %59 = vector.broadcast %58 : vector<1x256xbf16> to vector<6x256xbf16>
    %60 = arith.mulf %57, %59 : vector<6x256xbf16>
    %61 = vector.extract_strided_slice %35 {offsets = [0, 1], sizes = [6, 255], strides = [1, 1]} : vector<6x256xbf16> to vector<6x255xbf16>
    %62 = vector.extract_strided_slice %35 {offsets = [0, 0], sizes = [6, 1], strides = [1, 1]} : vector<6x256xbf16> to vector<6x1xbf16>
    %63 = tpu.concatenate %61, %62 in 1 : vector<6x255xbf16>, vector<6x1xbf16> -> vector<6x256xbf16>
    %64 = vector.extract_strided_slice %6 {offsets = [5, 0], sizes = [1, 256], strides = [1, 1]} : vector<9x256xbf16> to vector<1x256xbf16>
    %65 = vector.broadcast %64 : vector<1x256xbf16> to vector<6x256xbf16>
    %66 = arith.mulf %63, %65 : vector<6x256xbf16>
    %67 = vector.extract_strided_slice %35 {offsets = [0, 15], sizes = [6, 241], strides = [1, 1]} : vector<6x256xbf16> to vector<6x241xbf16>
    %68 = vector.extract_strided_slice %35 {offsets = [0, 0], sizes = [6, 15], strides = [1, 1]} : vector<6x256xbf16> to vector<6x15xbf16>
    %69 = tpu.concatenate %67, %68 in 1 : vector<6x241xbf16>, vector<6x15xbf16> -> vector<6x256xbf16>
    %70 = vector.extract_strided_slice %6 {offsets = [6, 0], sizes = [1, 256], strides = [1, 1]} : vector<9x256xbf16> to vector<1x256xbf16>
    %71 = vector.broadcast %70 : vector<1x256xbf16> to vector<6x256xbf16>
    %72 = arith.mulf %69, %71 : vector<6x256xbf16>
    %73 = vector.extract_strided_slice %35 {offsets = [0, 16], sizes = [6, 240], strides = [1, 1]} : vector<6x256xbf16> to vector<6x240xbf16>
    %74 = vector.extract_strided_slice %35 {offsets = [0, 0], sizes = [6, 16], strides = [1, 1]} : vector<6x256xbf16> to vector<6x16xbf16>
    %75 = tpu.concatenate %73, %74 in 1 : vector<6x240xbf16>, vector<6x16xbf16> -> vector<6x256xbf16>
    %76 = vector.extract_strided_slice %6 {offsets = [7, 0], sizes = [1, 256], strides = [1, 1]} : vector<9x256xbf16> to vector<1x256xbf16>
    %77 = vector.broadcast %76 : vector<1x256xbf16> to vector<6x256xbf16>
    %78 = arith.mulf %75, %77 : vector<6x256xbf16>
    %79 = vector.extract_strided_slice %35 {offsets = [0, 17], sizes = [6, 239], strides = [1, 1]} : vector<6x256xbf16> to vector<6x239xbf16>
    %80 = vector.extract_strided_slice %35 {offsets = [0, 0], sizes = [6, 17], strides = [1, 1]} : vector<6x256xbf16> to vector<6x17xbf16>
    %81 = tpu.concatenate %79, %80 in 1 : vector<6x239xbf16>, vector<6x17xbf16> -> vector<6x256xbf16>
    %82 = vector.extract_strided_slice %6 {offsets = [8, 0], sizes = [1, 256], strides = [1, 1]} : vector<9x256xbf16> to vector<1x256xbf16>
    %83 = vector.broadcast %82 : vector<1x256xbf16> to vector<6x256xbf16>
    %84 = arith.mulf %81, %83 : vector<6x256xbf16>
    %85 = vector.extract_strided_slice %42 {offsets = [0, 0], sizes = [2, 256], strides = [1, 1]} : vector<6x256xbf16> to vector<2x256xbf16>
    %86 = vector.extract_strided_slice %48 {offsets = [0, 0], sizes = [2, 256], strides = [1, 1]} : vector<6x256xbf16> to vector<2x256xbf16>
    %87 = vector.extract_strided_slice %54 {offsets = [0, 0], sizes = [2, 256], strides = [1, 1]} : vector<6x256xbf16> to vector<2x256xbf16>
    %88 = vector.extract_strided_slice %60 {offsets = [0, 0], sizes = [2, 256], strides = [1, 1]} : vector<6x256xbf16> to vector<2x256xbf16>
    %89 = vector.extract_strided_slice %35 {offsets = [0, 0], sizes = [2, 256], strides = [1, 1]} : vector<6x256xbf16> to vector<2x256xbf16>
    %90 = vector.extract_strided_slice %66 {offsets = [0, 0], sizes = [2, 256], strides = [1, 1]} : vector<6x256xbf16> to vector<2x256xbf16>
    %91 = vector.extract_strided_slice %72 {offsets = [0, 0], sizes = [2, 256], strides = [1, 1]} : vector<6x256xbf16> to vector<2x256xbf16>
    %92 = vector.extract_strided_slice %78 {offsets = [0, 0], sizes = [2, 256], strides = [1, 1]} : vector<6x256xbf16> to vector<2x256xbf16>
    %93 = vector.extract_strided_slice %84 {offsets = [0, 0], sizes = [2, 256], strides = [1, 1]} : vector<6x256xbf16> to vector<2x256xbf16>
    %94 = tpu.concatenate %85, %86, %87, %88, %89, %90, %91, %92, %93 in 0 : vector<2x256xbf16>, vector<2x256xbf16>, vector<2x256xbf16>, vector<2x256xbf16>, vector<2x256xbf16>, vector<2x256xbf16>, vector<2x256xbf16>, vector<2x256xbf16>, vector<2x256xbf16> -> vector<18x256xbf16>
    %c0_18 = arith.constant 0 : index
    %c0_19 = arith.constant 0 : index
    %c0_20 = arith.constant 0 : index
    %95 = vector.load %arg5[%c0_18, %c0_19, %c0_20] : memref<3x4x18xbf16, #tpu.memory_space<vmem>>, vector<1x4x18xbf16>
    %96 = vector.shape_cast %95 : vector<1x4x18xbf16> to vector<4x18xbf16>
    %cst_21 = arith.constant dense<0.000000e+00> : vector<4x256xf32>
    %97 = tpu.matmul %96, %94, %cst_21 {dimension_numbers = #tpu.dot_dimension_numbers<[1], [0], [0], [1], [0, 0, 1, 1], [], []>} : vector<4x18xbf16>, vector<18x256xbf16>, vector<4x256xf32> -> vector<4x256xf32>
    %98 = vector.extract_strided_slice %42 {offsets = [2, 0], sizes = [2, 256], strides = [1, 1]} : vector<6x256xbf16> to vector<2x256xbf16>
    %99 = vector.extract_strided_slice %48 {offsets = [2, 0], sizes = [2, 256], strides = [1, 1]} : vector<6x256xbf16> to vector<2x256xbf16>
    %100 = vector.extract_strided_slice %54 {offsets = [2, 0], sizes = [2, 256], strides = [1, 1]} : vector<6x256xbf16> to vector<2x256xbf16>
    %101 = vector.extract_strided_slice %60 {offsets = [2, 0], sizes = [2, 256], strides = [1, 1]} : vector<6x256xbf16> to vector<2x256xbf16>
    %102 = vector.extract_strided_slice %35 {offsets = [2, 0], sizes = [2, 256], strides = [1, 1]} : vector<6x256xbf16> to vector<2x256xbf16>
    %103 = vector.extract_strided_slice %66 {offsets = [2, 0], sizes = [2, 256], strides = [1, 1]} : vector<6x256xbf16> to vector<2x256xbf16>
    %104 = vector.extract_strided_slice %72 {offsets = [2, 0], sizes = [2, 256], strides = [1, 1]} : vector<6x256xbf16> to vector<2x256xbf16>
    %105 = vector.extract_strided_slice %78 {offsets = [2, 0], sizes = [2, 256], strides = [1, 1]} : vector<6x256xbf16> to vector<2x256xbf16>
    %106 = vector.extract_strided_slice %84 {offsets = [2, 0], sizes = [2, 256], strides = [1, 1]} : vector<6x256xbf16> to vector<2x256xbf16>
    %107 = tpu.concatenate %98, %99, %100, %101, %102, %103, %104, %105, %106 in 0 : vector<2x256xbf16>, vector<2x256xbf16>, vector<2x256xbf16>, vector<2x256xbf16>, vector<2x256xbf16>, vector<2x256xbf16>, vector<2x256xbf16>, vector<2x256xbf16>, vector<2x256xbf16> -> vector<18x256xbf16>
    %c1 = arith.constant 1 : index
    %c0_22 = arith.constant 0 : index
    %c0_23 = arith.constant 0 : index
    %108 = vector.load %arg5[%c1, %c0_22, %c0_23] : memref<3x4x18xbf16, #tpu.memory_space<vmem>>, vector<1x4x18xbf16>
    %109 = vector.shape_cast %108 : vector<1x4x18xbf16> to vector<4x18xbf16>
    %cst_24 = arith.constant dense<0.000000e+00> : vector<4x256xf32>
    %110 = tpu.matmul %109, %107, %cst_24 {dimension_numbers = #tpu.dot_dimension_numbers<[1], [0], [0], [1], [0, 0, 1, 1], [], []>} : vector<4x18xbf16>, vector<18x256xbf16>, vector<4x256xf32> -> vector<4x256xf32>
    %111 = vector.extract_strided_slice %42 {offsets = [4, 0], sizes = [2, 256], strides = [1, 1]} : vector<6x256xbf16> to vector<2x256xbf16>
    %112 = vector.extract_strided_slice %48 {offsets = [4, 0], sizes = [2, 256], strides = [1, 1]} : vector<6x256xbf16> to vector<2x256xbf16>
    %113 = vector.extract_strided_slice %54 {offsets = [4, 0], sizes = [2, 256], strides = [1, 1]} : vector<6x256xbf16> to vector<2x256xbf16>
    %114 = vector.extract_strided_slice %60 {offsets = [4, 0], sizes = [2, 256], strides = [1, 1]} : vector<6x256xbf16> to vector<2x256xbf16>
    %115 = vector.extract_strided_slice %35 {offsets = [4, 0], sizes = [2, 256], strides = [1, 1]} : vector<6x256xbf16> to vector<2x256xbf16>
    %116 = vector.extract_strided_slice %66 {offsets = [4, 0], sizes = [2, 256], strides = [1, 1]} : vector<6x256xbf16> to vector<2x256xbf16>
    %117 = vector.extract_strided_slice %72 {offsets = [4, 0], sizes = [2, 256], strides = [1, 1]} : vector<6x256xbf16> to vector<2x256xbf16>
    %118 = vector.extract_strided_slice %78 {offsets = [4, 0], sizes = [2, 256], strides = [1, 1]} : vector<6x256xbf16> to vector<2x256xbf16>
    %119 = vector.extract_strided_slice %84 {offsets = [4, 0], sizes = [2, 256], strides = [1, 1]} : vector<6x256xbf16> to vector<2x256xbf16>
    %120 = tpu.concatenate %111, %112, %113, %114, %115, %116, %117, %118, %119 in 0 : vector<2x256xbf16>, vector<2x256xbf16>, vector<2x256xbf16>, vector<2x256xbf16>, vector<2x256xbf16>, vector<2x256xbf16>, vector<2x256xbf16>, vector<2x256xbf16>, vector<2x256xbf16> -> vector<18x256xbf16>
    %c2 = arith.constant 2 : index
    %c0_25 = arith.constant 0 : index
    %c0_26 = arith.constant 0 : index
    %121 = vector.load %arg5[%c2, %c0_25, %c0_26] : memref<3x4x18xbf16, #tpu.memory_space<vmem>>, vector<1x4x18xbf16>
    %122 = vector.shape_cast %121 : vector<1x4x18xbf16> to vector<4x18xbf16>
    %cst_27 = arith.constant dense<0.000000e+00> : vector<4x256xf32>
    %123 = tpu.matmul %122, %120, %cst_27 {dimension_numbers = #tpu.dot_dimension_numbers<[1], [0], [0], [1], [0, 0, 1, 1], [], []>} : vector<4x18xbf16>, vector<18x256xbf16>, vector<4x256xf32> -> vector<4x256xf32>
    %124 = tpu.concatenate %97, %110, %123 in 0 : vector<4x256xf32>, vector<4x256xf32>, vector<4x256xf32> -> vector<12x256xf32>
    %125 = vector.broadcast %36 : vector<12x1xf32> to vector<12x256xf32>
    %126 = arith.addf %124, %125 : vector<12x256xf32>
    %127 = vector.extract_strided_slice %5 {offsets = [0, 0], sizes = [12, 1], strides = [1, 1]} : vector<24x1xf32> to vector<12x1xf32>
    %128 = vector.extract_strided_slice %5 {offsets = [12, 0], sizes = [12, 1], strides = [1, 1]} : vector<24x1xf32> to vector<12x1xf32>
    %cst_28 = arith.constant 1.000000e+00 : f32
    %129 = vector.broadcast %cst_28 : f32 to vector<12x1xf32>
    %130 = arith.addf %127, %129 : vector<12x1xf32>
    %131 = vector.broadcast %130 : vector<12x1xf32> to vector<12x256xf32>
    %132 = arith.mulf %131, %126 : vector<12x256xf32>
    %133 = vector.broadcast %128 : vector<12x1xf32> to vector<12x256xf32>
    %134 = arith.addf %132, %133 : vector<12x256xf32>
    %cst_29 = arith.constant dense<0.000000e+00> : vector<12xf32>
    %135 = vector.multi_reduction <add>, %134, %cst_29 [1] : vector<12x256xf32> to vector<12xf32>
    %136 = vector.shape_cast %135 : vector<12xf32> to vector<12x1xf32>
    %cst_30 = arith.constant 2.560000e+02 : f32
    %137 = vector.broadcast %cst_30 : f32 to vector<12x1xf32>
    %138 = arith.divf %136, %137 : vector<12x1xf32>
    %139 = arith.mulf %134, %134 : vector<12x256xf32>
    %cst_31 = arith.constant dense<0.000000e+00> : vector<12xf32>
    %140 = vector.multi_reduction <add>, %139, %cst_31 [1] : vector<12x256xf32> to vector<12xf32>
    %141 = vector.shape_cast %140 : vector<12xf32> to vector<12x1xf32>
    %cst_32 = arith.constant 2.560000e+02 : f32
    %142 = vector.broadcast %cst_32 : f32 to vector<12x1xf32>
    %143 = arith.divf %141, %142 : vector<12x1xf32>
    %144 = arith.mulf %138, %138 : vector<12x1xf32>
    %145 = arith.subf %143, %144 : vector<12x1xf32>
    %cst_33 = arith.constant 0.000000e+00 : f32
    %146 = vector.broadcast %cst_33 : f32 to vector<12x1xf32>
    %147 = arith.maximumf %145, %146 : vector<12x1xf32>
    %148 = vector.broadcast %138 : vector<12x1xf32> to vector<12x256xf32>
    %149 = arith.subf %134, %148 : vector<12x256xf32>
    %cst_34 = arith.constant 9.99999974E-6 : f32
    %150 = vector.broadcast %cst_34 : f32 to vector<12x1xf32>
    %151 = arith.addf %147, %150 : vector<12x1xf32>
    %152 = math.rsqrt %151 : vector<12x1xf32>
    %153 = vector.broadcast %152 : vector<12x1xf32> to vector<12x256xf32>
    %154 = arith.mulf %149, %153 : vector<12x256xf32>
    %155 = arith.negf %154 : vector<12x256xf32>
    %156 = math.exp %155 : vector<12x256xf32>
    %cst_35 = arith.constant 1.000000e+00 : f32
    %157 = vector.broadcast %cst_35 : f32 to vector<12x256xf32>
    %158 = arith.addf %157, %156 : vector<12x256xf32>
    %159 = arith.divf %157, %158 : vector<12x256xf32>
    %160 = arith.mulf %154, %159 : vector<12x256xf32>
    %161 = arith.truncf %160 : vector<12x256xf32> to vector<12x256xbf16>
    %c0_36 = arith.constant 0 : index
    %c0_37 = arith.constant 0 : index
    %162 = vector.load %arg8[%c0_36, %c0_37] : memref<12x1xf32, #tpu.memory_space<vmem>>, vector<12x1xf32>
    %163 = vector.extract_strided_slice %161 {offsets = [0, 239], sizes = [12, 17], strides = [1, 1]} : vector<12x256xbf16> to vector<12x17xbf16>
    %164 = vector.extract_strided_slice %161 {offsets = [0, 0], sizes = [12, 239], strides = [1, 1]} : vector<12x256xbf16> to vector<12x239xbf16>
    %165 = tpu.concatenate %163, %164 in 1 : vector<12x17xbf16>, vector<12x239xbf16> -> vector<12x256xbf16>
    %166 = vector.extract_strided_slice %6 {offsets = [0, 0], sizes = [1, 256], strides = [1, 1]} : vector<9x256xbf16> to vector<1x256xbf16>
    %167 = vector.broadcast %166 : vector<1x256xbf16> to vector<12x256xbf16>
    %168 = arith.mulf %165, %167 : vector<12x256xbf16>
    %169 = vector.extract_strided_slice %161 {offsets = [0, 240], sizes = [12, 16], strides = [1, 1]} : vector<12x256xbf16> to vector<12x16xbf16>
    %170 = vector.extract_strided_slice %161 {offsets = [0, 0], sizes = [12, 240], strides = [1, 1]} : vector<12x256xbf16> to vector<12x240xbf16>
    %171 = tpu.concatenate %169, %170 in 1 : vector<12x16xbf16>, vector<12x240xbf16> -> vector<12x256xbf16>
    %172 = vector.extract_strided_slice %6 {offsets = [1, 0], sizes = [1, 256], strides = [1, 1]} : vector<9x256xbf16> to vector<1x256xbf16>
    %173 = vector.broadcast %172 : vector<1x256xbf16> to vector<12x256xbf16>
    %174 = arith.mulf %171, %173 : vector<12x256xbf16>
    %175 = vector.extract_strided_slice %161 {offsets = [0, 241], sizes = [12, 15], strides = [1, 1]} : vector<12x256xbf16> to vector<12x15xbf16>
    %176 = vector.extract_strided_slice %161 {offsets = [0, 0], sizes = [12, 241], strides = [1, 1]} : vector<12x256xbf16> to vector<12x241xbf16>
    %177 = tpu.concatenate %175, %176 in 1 : vector<12x15xbf16>, vector<12x241xbf16> -> vector<12x256xbf16>
    %178 = vector.extract_strided_slice %6 {offsets = [2, 0], sizes = [1, 256], strides = [1, 1]} : vector<9x256xbf16> to vector<1x256xbf16>
    %179 = vector.broadcast %178 : vector<1x256xbf16> to vector<12x256xbf16>
    %180 = arith.mulf %177, %179 : vector<12x256xbf16>
    %181 = vector.extract_strided_slice %161 {offsets = [0, 255], sizes = [12, 1], strides = [1, 1]} : vector<12x256xbf16> to vector<12x1xbf16>
    %182 = vector.extract_strided_slice %161 {offsets = [0, 0], sizes = [12, 255], strides = [1, 1]} : vector<12x256xbf16> to vector<12x255xbf16>
    %183 = tpu.concatenate %181, %182 in 1 : vector<12x1xbf16>, vector<12x255xbf16> -> vector<12x256xbf16>
    %184 = vector.extract_strided_slice %6 {offsets = [3, 0], sizes = [1, 256], strides = [1, 1]} : vector<9x256xbf16> to vector<1x256xbf16>
    %185 = vector.broadcast %184 : vector<1x256xbf16> to vector<12x256xbf16>
    %186 = arith.mulf %183, %185 : vector<12x256xbf16>
    %187 = vector.extract_strided_slice %161 {offsets = [0, 1], sizes = [12, 255], strides = [1, 1]} : vector<12x256xbf16> to vector<12x255xbf16>
    %188 = vector.extract_strided_slice %161 {offsets = [0, 0], sizes = [12, 1], strides = [1, 1]} : vector<12x256xbf16> to vector<12x1xbf16>
    %189 = tpu.concatenate %187, %188 in 1 : vector<12x255xbf16>, vector<12x1xbf16> -> vector<12x256xbf16>
    %190 = vector.extract_strided_slice %6 {offsets = [5, 0], sizes = [1, 256], strides = [1, 1]} : vector<9x256xbf16> to vector<1x256xbf16>
    %191 = vector.broadcast %190 : vector<1x256xbf16> to vector<12x256xbf16>
    %192 = arith.mulf %189, %191 : vector<12x256xbf16>
    %193 = vector.extract_strided_slice %161 {offsets = [0, 15], sizes = [12, 241], strides = [1, 1]} : vector<12x256xbf16> to vector<12x241xbf16>
    %194 = vector.extract_strided_slice %161 {offsets = [0, 0], sizes = [12, 15], strides = [1, 1]} : vector<12x256xbf16> to vector<12x15xbf16>
    %195 = tpu.concatenate %193, %194 in 1 : vector<12x241xbf16>, vector<12x15xbf16> -> vector<12x256xbf16>
    %196 = vector.extract_strided_slice %6 {offsets = [6, 0], sizes = [1, 256], strides = [1, 1]} : vector<9x256xbf16> to vector<1x256xbf16>
    %197 = vector.broadcast %196 : vector<1x256xbf16> to vector<12x256xbf16>
    %198 = arith.mulf %195, %197 : vector<12x256xbf16>
    %199 = vector.extract_strided_slice %161 {offsets = [0, 16], sizes = [12, 240], strides = [1, 1]} : vector<12x256xbf16> to vector<12x240xbf16>
    %200 = vector.extract_strided_slice %161 {offsets = [0, 0], sizes = [12, 16], strides = [1, 1]} : vector<12x256xbf16> to vector<12x16xbf16>
    %201 = tpu.concatenate %199, %200 in 1 : vector<12x240xbf16>, vector<12x16xbf16> -> vector<12x256xbf16>
    %202 = vector.extract_strided_slice %6 {offsets = [7, 0], sizes = [1, 256], strides = [1, 1]} : vector<9x256xbf16> to vector<1x256xbf16>
    %203 = vector.broadcast %202 : vector<1x256xbf16> to vector<12x256xbf16>
    %204 = arith.mulf %201, %203 : vector<12x256xbf16>
    %205 = vector.extract_strided_slice %161 {offsets = [0, 17], sizes = [12, 239], strides = [1, 1]} : vector<12x256xbf16> to vector<12x239xbf16>
    %206 = vector.extract_strided_slice %161 {offsets = [0, 0], sizes = [12, 17], strides = [1, 1]} : vector<12x256xbf16> to vector<12x17xbf16>
    %207 = tpu.concatenate %205, %206 in 1 : vector<12x239xbf16>, vector<12x17xbf16> -> vector<12x256xbf16>
    %208 = vector.extract_strided_slice %6 {offsets = [8, 0], sizes = [1, 256], strides = [1, 1]} : vector<9x256xbf16> to vector<1x256xbf16>
    %209 = vector.broadcast %208 : vector<1x256xbf16> to vector<12x256xbf16>
    %210 = arith.mulf %207, %209 : vector<12x256xbf16>
    %211 = vector.extract_strided_slice %168 {offsets = [0, 0], sizes = [4, 256], strides = [1, 1]} : vector<12x256xbf16> to vector<4x256xbf16>
    %212 = vector.extract_strided_slice %174 {offsets = [0, 0], sizes = [4, 256], strides = [1, 1]} : vector<12x256xbf16> to vector<4x256xbf16>
    %213 = vector.extract_strided_slice %180 {offsets = [0, 0], sizes = [4, 256], strides = [1, 1]} : vector<12x256xbf16> to vector<4x256xbf16>
    %214 = vector.extract_strided_slice %186 {offsets = [0, 0], sizes = [4, 256], strides = [1, 1]} : vector<12x256xbf16> to vector<4x256xbf16>
    %215 = vector.extract_strided_slice %161 {offsets = [0, 0], sizes = [4, 256], strides = [1, 1]} : vector<12x256xbf16> to vector<4x256xbf16>
    %216 = vector.extract_strided_slice %192 {offsets = [0, 0], sizes = [4, 256], strides = [1, 1]} : vector<12x256xbf16> to vector<4x256xbf16>
    %217 = vector.extract_strided_slice %198 {offsets = [0, 0], sizes = [4, 256], strides = [1, 1]} : vector<12x256xbf16> to vector<4x256xbf16>
    %218 = vector.extract_strided_slice %204 {offsets = [0, 0], sizes = [4, 256], strides = [1, 1]} : vector<12x256xbf16> to vector<4x256xbf16>
    %219 = vector.extract_strided_slice %210 {offsets = [0, 0], sizes = [4, 256], strides = [1, 1]} : vector<12x256xbf16> to vector<4x256xbf16>
    %220 = tpu.concatenate %211, %212, %213, %214, %215, %216, %217, %218, %219 in 0 : vector<4x256xbf16>, vector<4x256xbf16>, vector<4x256xbf16>, vector<4x256xbf16>, vector<4x256xbf16>, vector<4x256xbf16>, vector<4x256xbf16>, vector<4x256xbf16>, vector<4x256xbf16> -> vector<36x256xbf16>
    %c0_38 = arith.constant 0 : index
    %c0_39 = arith.constant 0 : index
    %c0_40 = arith.constant 0 : index
    %221 = vector.load %arg7[%c0_38, %c0_39, %c0_40] : memref<3x4x36xbf16, #tpu.memory_space<vmem>>, vector<1x4x36xbf16>
    %222 = vector.shape_cast %221 : vector<1x4x36xbf16> to vector<4x36xbf16>
    %cst_41 = arith.constant dense<0.000000e+00> : vector<4x256xf32>
    %223 = tpu.matmul %222, %220, %cst_41 {dimension_numbers = #tpu.dot_dimension_numbers<[1], [0], [0], [1], [0, 0, 1, 1], [], []>} : vector<4x36xbf16>, vector<36x256xbf16>, vector<4x256xf32> -> vector<4x256xf32>
    %224 = vector.extract_strided_slice %168 {offsets = [4, 0], sizes = [4, 256], strides = [1, 1]} : vector<12x256xbf16> to vector<4x256xbf16>
    %225 = vector.extract_strided_slice %174 {offsets = [4, 0], sizes = [4, 256], strides = [1, 1]} : vector<12x256xbf16> to vector<4x256xbf16>
    %226 = vector.extract_strided_slice %180 {offsets = [4, 0], sizes = [4, 256], strides = [1, 1]} : vector<12x256xbf16> to vector<4x256xbf16>
    %227 = vector.extract_strided_slice %186 {offsets = [4, 0], sizes = [4, 256], strides = [1, 1]} : vector<12x256xbf16> to vector<4x256xbf16>
    %228 = vector.extract_strided_slice %161 {offsets = [4, 0], sizes = [4, 256], strides = [1, 1]} : vector<12x256xbf16> to vector<4x256xbf16>
    %229 = vector.extract_strided_slice %192 {offsets = [4, 0], sizes = [4, 256], strides = [1, 1]} : vector<12x256xbf16> to vector<4x256xbf16>
    %230 = vector.extract_strided_slice %198 {offsets = [4, 0], sizes = [4, 256], strides = [1, 1]} : vector<12x256xbf16> to vector<4x256xbf16>
    %231 = vector.extract_strided_slice %204 {offsets = [4, 0], sizes = [4, 256], strides = [1, 1]} : vector<12x256xbf16> to vector<4x256xbf16>
    %232 = vector.extract_strided_slice %210 {offsets = [4, 0], sizes = [4, 256], strides = [1, 1]} : vector<12x256xbf16> to vector<4x256xbf16>
    %233 = tpu.concatenate %224, %225, %226, %227, %228, %229, %230, %231, %232 in 0 : vector<4x256xbf16>, vector<4x256xbf16>, vector<4x256xbf16>, vector<4x256xbf16>, vector<4x256xbf16>, vector<4x256xbf16>, vector<4x256xbf16>, vector<4x256xbf16>, vector<4x256xbf16> -> vector<36x256xbf16>
    %c1_42 = arith.constant 1 : index
    %c0_43 = arith.constant 0 : index
    %c0_44 = arith.constant 0 : index
    %234 = vector.load %arg7[%c1_42, %c0_43, %c0_44] : memref<3x4x36xbf16, #tpu.memory_space<vmem>>, vector<1x4x36xbf16>
    %235 = vector.shape_cast %234 : vector<1x4x36xbf16> to vector<4x36xbf16>
    %cst_45 = arith.constant dense<0.000000e+00> : vector<4x256xf32>
    %236 = tpu.matmul %235, %233, %cst_45 {dimension_numbers = #tpu.dot_dimension_numbers<[1], [0], [0], [1], [0, 0, 1, 1], [], []>} : vector<4x36xbf16>, vector<36x256xbf16>, vector<4x256xf32> -> vector<4x256xf32>
    %237 = vector.extract_strided_slice %168 {offsets = [8, 0], sizes = [4, 256], strides = [1, 1]} : vector<12x256xbf16> to vector<4x256xbf16>
    %238 = vector.extract_strided_slice %174 {offsets = [8, 0], sizes = [4, 256], strides = [1, 1]} : vector<12x256xbf16> to vector<4x256xbf16>
    %239 = vector.extract_strided_slice %180 {offsets = [8, 0], sizes = [4, 256], strides = [1, 1]} : vector<12x256xbf16> to vector<4x256xbf16>
    %240 = vector.extract_strided_slice %186 {offsets = [8, 0], sizes = [4, 256], strides = [1, 1]} : vector<12x256xbf16> to vector<4x256xbf16>
    %241 = vector.extract_strided_slice %161 {offsets = [8, 0], sizes = [4, 256], strides = [1, 1]} : vector<12x256xbf16> to vector<4x256xbf16>
    %242 = vector.extract_strided_slice %192 {offsets = [8, 0], sizes = [4, 256], strides = [1, 1]} : vector<12x256xbf16> to vector<4x256xbf16>
    %243 = vector.extract_strided_slice %198 {offsets = [8, 0], sizes = [4, 256], strides = [1, 1]} : vector<12x256xbf16> to vector<4x256xbf16>
    %244 = vector.extract_strided_slice %204 {offsets = [8, 0], sizes = [4, 256], strides = [1, 1]} : vector<12x256xbf16> to vector<4x256xbf16>
    %245 = vector.extract_strided_slice %210 {offsets = [8, 0], sizes = [4, 256], strides = [1, 1]} : vector<12x256xbf16> to vector<4x256xbf16>
    %246 = tpu.concatenate %237, %238, %239, %240, %241, %242, %243, %244, %245 in 0 : vector<4x256xbf16>, vector<4x256xbf16>, vector<4x256xbf16>, vector<4x256xbf16>, vector<4x256xbf16>, vector<4x256xbf16>, vector<4x256xbf16>, vector<4x256xbf16>, vector<4x256xbf16> -> vector<36x256xbf16>
    %c2_46 = arith.constant 2 : index
    %c0_47 = arith.constant 0 : index
    %c0_48 = arith.constant 0 : index
    %247 = vector.load %arg7[%c2_46, %c0_47, %c0_48] : memref<3x4x36xbf16, #tpu.memory_space<vmem>>, vector<1x4x36xbf16>
    %248 = vector.shape_cast %247 : vector<1x4x36xbf16> to vector<4x36xbf16>
    %cst_49 = arith.constant dense<0.000000e+00> : vector<4x256xf32>
    %249 = tpu.matmul %248, %246, %cst_49 {dimension_numbers = #tpu.dot_dimension_numbers<[1], [0], [0], [1], [0, 0, 1, 1], [], []>} : vector<4x36xbf16>, vector<36x256xbf16>, vector<4x256xf32> -> vector<4x256xf32>
    %250 = tpu.concatenate %223, %236, %249 in 0 : vector<4x256xf32>, vector<4x256xf32>, vector<4x256xf32> -> vector<12x256xf32>
    %251 = vector.broadcast %162 : vector<12x1xf32> to vector<12x256xf32>
    %252 = arith.addf %250, %251 : vector<12x256xf32>
    %253 = arith.truncf %1 : vector<6x256xf32> to vector<6x256xbf16>
    %c0_50 = arith.constant 0 : index
    %c0_51 = arith.constant 0 : index
    %c0_52 = arith.constant 0 : index
    %254 = vector.load %arg9[%c0_50, %c0_51, %c0_52] : memref<3x4x2xbf16, #tpu.memory_space<vmem>>, vector<1x4x2xbf16>
    %255 = vector.shape_cast %254 : vector<1x4x2xbf16> to vector<4x2xbf16>
    %256 = vector.extract_strided_slice %253 {offsets = [0, 0], sizes = [2, 256], strides = [1, 1]} : vector<6x256xbf16> to vector<2x256xbf16>
    %cst_53 = arith.constant dense<0.000000e+00> : vector<4x256xf32>
    %257 = tpu.matmul %255, %256, %cst_53 {dimension_numbers = #tpu.dot_dimension_numbers<[1], [0], [0], [1], [0, 0, 1, 1], [], []>} : vector<4x2xbf16>, vector<2x256xbf16>, vector<4x256xf32> -> vector<4x256xf32>
    %c1_54 = arith.constant 1 : index
    %c0_55 = arith.constant 0 : index
    %c0_56 = arith.constant 0 : index
    %258 = vector.load %arg9[%c1_54, %c0_55, %c0_56] : memref<3x4x2xbf16, #tpu.memory_space<vmem>>, vector<1x4x2xbf16>
    %259 = vector.shape_cast %258 : vector<1x4x2xbf16> to vector<4x2xbf16>
    %260 = vector.extract_strided_slice %253 {offsets = [2, 0], sizes = [2, 256], strides = [1, 1]} : vector<6x256xbf16> to vector<2x256xbf16>
    %cst_57 = arith.constant dense<0.000000e+00> : vector<4x256xf32>
    %261 = tpu.matmul %259, %260, %cst_57 {dimension_numbers = #tpu.dot_dimension_numbers<[1], [0], [0], [1], [0, 0, 1, 1], [], []>} : vector<4x2xbf16>, vector<2x256xbf16>, vector<4x256xf32> -> vector<4x256xf32>
    %c2_58 = arith.constant 2 : index
    %c0_59 = arith.constant 0 : index
    %c0_60 = arith.constant 0 : index
    %262 = vector.load %arg9[%c2_58, %c0_59, %c0_60] : memref<3x4x2xbf16, #tpu.memory_space<vmem>>, vector<1x4x2xbf16>
    %263 = vector.shape_cast %262 : vector<1x4x2xbf16> to vector<4x2xbf16>
    %264 = vector.extract_strided_slice %253 {offsets = [4, 0], sizes = [2, 256], strides = [1, 1]} : vector<6x256xbf16> to vector<2x256xbf16>
    %cst_61 = arith.constant dense<0.000000e+00> : vector<4x256xf32>
    %265 = tpu.matmul %263, %264, %cst_61 {dimension_numbers = #tpu.dot_dimension_numbers<[1], [0], [0], [1], [0, 0, 1, 1], [], []>} : vector<4x2xbf16>, vector<2x256xbf16>, vector<4x256xf32> -> vector<4x256xf32>
    %266 = tpu.concatenate %257, %261, %265 in 0 : vector<4x256xf32>, vector<4x256xf32>, vector<4x256xf32> -> vector<12x256xf32>
    %c0_62 = arith.constant 0 : index
    %c0_63 = arith.constant 0 : index
    %267 = vector.load %arg10[%c0_62, %c0_63] : memref<12x1xf32, #tpu.memory_space<vmem>>, vector<12x1xf32>
    %268 = vector.broadcast %267 : vector<12x1xf32> to vector<12x256xf32>
    %269 = arith.addf %266, %268 : vector<12x256xf32>
    %270 = arith.addf %252, %269 : vector<12x256xf32>
    %c0_64 = arith.constant 0 : index
    %c0_65 = arith.constant 0 : index
    %c0_66 = arith.constant 0 : index
    %271 = vector.load %arg11[%c0_64, %c0_65, %c0_66] : memref<1x12x256xf32, #tpu.memory_space<vmem>>, vector<1x12x256xf32>
    %272 = vector.shape_cast %271 : vector<1x12x256xf32> to vector<12x256xf32>
    %273 = vector.shape_cast %270 : vector<12x256xf32> to vector<1x12x256xf32>
    tpu.vector_store %arg11[%c0_64, %c0_65, %c0_66], %273 {strides = array<i32>} : memref<1x12x256xf32, #tpu.memory_space<vmem>>, vector<1x12x256xf32>,
    return
  }
  func.func @transform_0(%arg0: i32) -> (i32, i32, i32) {
    %c0_i32 = arith.constant 0 : i32
    %c0_i32_0 = arith.constant 0 : i32
    %c0_i32_1 = arith.constant 0 : i32
    return %arg0, %c0_i32, %c0_i32_0 : i32, i32, i32
  }
  func.func @transform_1(%arg0: i32) -> (i32, i32, i32) {
    %c0_i32 = arith.constant 0 : i32
    %c0_i32_0 = arith.constant 0 : i32
    %c0_i32_1 = arith.constant 0 : i32
    return %arg0, %c0_i32, %c0_i32_0 : i32, i32, i32
  }
  func.func @transform_2(%arg0: i32) -> (i32, i32, i32) {
    %c0_i32 = arith.constant 0 : i32
    %c0_i32_0 = arith.constant 0 : i32
    %c0_i32_1 = arith.constant 0 : i32
    return %arg0, %c0_i32, %c0_i32_0 : i32, i32, i32
  }
  func.func @transform_3(%arg0: i32) -> (i32, i32) {
    %c0_i32 = arith.constant 0 : i32
    %c0_i32_0 = arith.constant 0 : i32
    %c0_i32_1 = arith.constant 0 : i32
    return %c0_i32, %c0_i32_0 : i32, i32
  }
  func.func @transform_4(%arg0: i32) -> (i32, i32, i32) {
    %c0_i32 = arith.constant 0 : i32
    %c0_i32_0 = arith.constant 0 : i32
    %c0_i32_1 = arith.constant 0 : i32
    %c0_i32_2 = arith.constant 0 : i32
    return %c0_i32, %c0_i32_0, %c0_i32_1 : i32, i32, i32
  }
  func.func @transform_5(%arg0: i32) -> (i32, i32) {
    %c0_i32 = arith.constant 0 : i32
    %c0_i32_0 = arith.constant 0 : i32
    %c0_i32_1 = arith.constant 0 : i32
    return %c0_i32, %c0_i32_0 : i32, i32
  }
  func.func @transform_6(%arg0: i32) -> (i32, i32, i32) {
    %c0_i32 = arith.constant 0 : i32
    %c0_i32_0 = arith.constant 0 : i32
    %c0_i32_1 = arith.constant 0 : i32
    %c0_i32_2 = arith.constant 0 : i32
    return %c0_i32, %c0_i32_0, %c0_i32_1 : i32, i32, i32
  }
  func.func @transform_7(%arg0: i32) -> (i32, i32) {
    %c0_i32 = arith.constant 0 : i32
    %c0_i32_0 = arith.constant 0 : i32
    %c0_i32_1 = arith.constant 0 : i32
    return %c0_i32, %c0_i32_0 : i32, i32
  }
  func.func @transform_8(%arg0: i32) -> (i32, i32, i32) {
    %c0_i32 = arith.constant 0 : i32
    %c0_i32_0 = arith.constant 0 : i32
    %c0_i32_1 = arith.constant 0 : i32
    %c0_i32_2 = arith.constant 0 : i32
    return %c0_i32, %c0_i32_0, %c0_i32_1 : i32, i32, i32
  }
  func.func @transform_9(%arg0: i32) -> (i32, i32) {
    %c0_i32 = arith.constant 0 : i32
    %c0_i32_0 = arith.constant 0 : i32
    %c0_i32_1 = arith.constant 0 : i32
    return %c0_i32, %c0_i32_0 : i32, i32
  }
  func.func @transform_10(%arg0: i32) -> (i32, i32, i32) {
    %c0_i32 = arith.constant 0 : i32
    %c0_i32_0 = arith.constant 0 : i32
    %c0_i32_1 = arith.constant 0 : i32
    return %arg0, %c0_i32, %c0_i32_0 : i32, i32, i32
  }
}

</mosaic_0001>

<llo_original>
// kernel: tpu_custom_call.1
$region0: #{tpu_custom_call.1}
  #allocation0 [shape = 'u32[]', space=smem, size = 0x4, offset = 0x4, fixed_abs, tag = 'smem constant byte address 0x4 - core index']
  #allocation1 [shape = 'u32[144,128]{1,0:T(1,128)}', space=vmem, size = 0x12000, scoped, tag = 'internal scratch']
  %s0 = inlined_call_operand.vmem [shape: f32[2,6,256], index: 0, kind: input, shape index: {}]
  %s1 = inlined_call_operand.vmem [shape: f32[2,6,1], index: 1, kind: input, shape index: {}]
  %s2 = inlined_call_operand.vmem [shape: f32[2,24,1], index: 2, kind: input, shape index: {}]
  %s3 = inlined_call_operand.vmem [shape: bf16[9,256], index: 3, kind: input, shape index: {}]
  %s4 = inlined_call_operand.vmem [shape: bf16[3,4,18], index: 4, kind: input, shape index: {}]
  %s5 = inlined_call_operand.vmem [shape: f32[12,1], index: 5, kind: input, shape index: {}]
  %s6 = inlined_call_operand.vmem [shape: bf16[3,4,36], index: 6, kind: input, shape index: {}]
  %s7 = inlined_call_operand.vmem [shape: f32[12,1], index: 7, kind: input, shape index: {}]
  %s8 = inlined_call_operand.vmem [shape: bf16[3,4,2], index: 8, kind: input, shape index: {}]
  %s9 = inlined_call_operand.vmem [shape: f32[12,1], index: 9, kind: input, shape index: {}]
  %s10 = inlined_call_operand.vmem [shape: f32[2,12,256], index: 10, kind: output, shape index: {}]
  %s11 = sld [smem:[#allocation0]]
  $region73: #{tpu_custom_call.1} parent=0
    _
  %s13 = ssub.s32 1, %s11
  %s14 = scalar_select 0, %s13, %s11
  loop: start=0, step=1, limit=4
  $region2: #{tpu_custom_call.1} parent=0 // loop_pre_header
    _
  $region3: #{tpu_custom_call.1} parent=0 // loop_header
    %s16 = sphi 0, %s20
    %p17 = scmp.ge.s32.totalorder %s16, 4
    %s26 = sphi 0, %s28
    %s29 = sphi 0, %s26
    %s30 = sphi 0, %s29
    %s46 = sphi 0, %s30
    %s52 = sphi 0, %s54
    %s55 = sphi 0, %s52
    %s56 = sphi 0, %s55
    %s72 = sphi 0, %s56
    %s78 = sphi 0, %s80
    %s81 = sphi 0, %s78
    %s82 = sphi 0, %s81
    %s98 = sphi 0, %s82
    %s102 = sphi 0, %s102
    %s104 = sphi 0, %s102
    %s105 = sphi 0, %s104
    %s119 = sphi 0, %s105
    %s123 = sphi 0, %s123
    %s125 = sphi 0, %s123
    %s126 = sphi 0, %s125
    %s140 = sphi 0, %s126
    %s144 = sphi 0, %s144
    %s146 = sphi 0, %s144
    %s147 = sphi 0, %s146
    %s161 = sphi 0, %s147
    %s165 = sphi 0, %s165
    %s167 = sphi 0, %s165
    %s168 = sphi 0, %s167
    %s182 = sphi 0, %s168
    %s186 = sphi 0, %s186
    %s188 = sphi 0, %s186
    %s189 = sphi 0, %s188
    %s203 = sphi 0, %s189
    %s207 = sphi 0, %s207
    %s209 = sphi 0, %s207
    %s210 = sphi 0, %s209
    %s224 = sphi 0, %s210
    %s228 = sphi 0, %s228
    %s230 = sphi 0, %s228
    %s231 = sphi 0, %s230
    %s245 = sphi 0, %s231
    %s251 = sphi 0, %s253
    %s254 = sphi 0, %s251
    %s255 = sphi 0, %s254
    %s271 = sphi 0, %s255
  $region4: #{tpu_custom_call.1} parent=0 // loop_header_branch
    %19 = sbr.rel (%p17) target = $region8
  $region5: #{tpu_custom_call.1} parent=0 // loop_body
    %s21 = ssub.s32 %s16, 1
    %s22 = ssub.s32 %s16, 2
    %s23 = sadd.s32 %s16, 1
    %s24 = ssub.s32 %s16, %s23
    %p25 = scmp.eq.s32.totalorder %s24, 0
    %s27 = sadd.s32 %s26, 1
    %s28 = scalar_select %p25, %s26, %s27
    %p31 = pneg %p25
    %p32 = scmp.eq.s32.totalorder %s16, 1
    %p33 = por %p31, %p32
    %p34 = scmp.ne.s32.totalorder %s26, %s29
    %p35 = scmp.eq.s32.totalorder %s16, 0
    %p36 = por %p34, %p35
    %p37 = scmp.ne.s32.totalorder %s26, %s29
    %p38 = scmp.eq.s32.totalorder %s21, 1
    %p39 = por %p37, %p38
    %p40 = scmp.ne.s32.totalorder %s29, %s30
    %p41 = scmp.eq.s32.totalorder %s21, 0
    %p42 = por %p40, %p41
    %p43 = scmp.ne.s32.totalorder %s29, %s30
    %p44 = scmp.eq.s32.totalorder %s22, 1
    %p45 = por %p43, %p44
    %p47 = scmp.ne.s32.totalorder %s30, %s46
    %p48 = scmp.eq.s32.totalorder %s22, 0
    %p49 = por %p47, %p48
    %s50 = ssub.s32 %s16, %s23
    %p51 = scmp.eq.s32.totalorder %s50, 0
    %s53 = sadd.s32 %s52, 1
    %s54 = scalar_select %p51, %s52, %s53
    %p57 = pneg %p51
    %p58 = scmp.eq.s32.totalorder %s16, 1
    %p59 = por %p57, %p58
    %p60 = scmp.ne.s32.totalorder %s52, %s55
    %p61 = scmp.eq.s32.totalorder %s16, 0
    %p62 = por %p60, %p61
    %p63 = scmp.ne.s32.totalorder %s52, %s55
    %p64 = scmp.eq.s32.totalorder %s21, 1
    %p65 = por %p63, %p64
    %p66 = scmp.ne.s32.totalorder %s55, %s56
    %p67 = scmp.eq.s32.totalorder %s21, 0
    %p68 = por %p66, %p67
    %p69 = scmp.ne.s32.totalorder %s55, %s56
    %p70 = scmp.eq.s32.totalorder %s22, 1
    %p71 = por %p69, %p70
    %p73 = scmp.ne.s32.totalorder %s56, %s72
    %p74 = scmp.eq.s32.totalorder %s22, 0
    %p75 = por %p73, %p74
    %s76 = ssub.s32 %s16, %s23
    %p77 = scmp.eq.s32.totalorder %s76, 0
    %s79 = sadd.s32 %s78, 1
    %s80 = scalar_select %p77, %s78, %s79
    %p83 = pneg %p77
    %p84 = scmp.eq.s32.totalorder %s16, 1
    %p85 = por %p83, %p84
    %p86 = scmp.ne.s32.totalorder %s78, %s81
    %p87 = scmp.eq.s32.totalorder %s16, 0
    %p88 = por %p86, %p87
    %p89 = scmp.ne.s32.totalorder %s78, %s81
    %p90 = scmp.eq.s32.totalorder %s21, 1
    %p91 = por %p89, %p90
    %p92 = scmp.ne.s32.totalorder %s81, %s82
    %p93 = scmp.eq.s32.totalorder %s21, 0
    %p94 = por %p92, %p93
    %p95 = scmp.ne.s32.totalorder %s81, %s82
    %p96 = scmp.eq.s32.totalorder %s22, 1
    %p97 = por %p95, %p96
    %p99 = scmp.ne.s32.totalorder %s82, %s98
    %p100 = scmp.eq.s32.totalorder %s22, 0
    %p101 = por %p99, %p100
    %s103 = sadd.s32 %s102, 1
    %p106 = scmp.eq.s32.totalorder %s16, 1
    %p107 = scmp.ne.s32.totalorder %s102, %s104
    %p108 = scmp.eq.s32.totalorder %s16, 0
    %p109 = por %p107, %p108
    %p110 = scmp.ne.s32.totalorder %s102, %s104
    %p111 = scmp.eq.s32.totalorder %s21, 1
    %p112 = por %p110, %p111
    %p113 = scmp.ne.s32.totalorder %s104, %s105
    %p114 = scmp.eq.s32.totalorder %s21, 0
    %p115 = por %p113, %p114
    %p116 = scmp.ne.s32.totalorder %s104, %s105
    %p117 = scmp.eq.s32.totalorder %s22, 1
    %p118 = por %p116, %p117
    %p120 = scmp.ne.s32.totalorder %s105, %s119
    %p121 = scmp.eq.s32.totalorder %s22, 0
    %p122 = por %p120, %p121
    %s124 = sadd.s32 %s123, 1
    %p127 = scmp.eq.s32.totalorder %s16, 1
    %p128 = scmp.ne.s32.totalorder %s123, %s125
    %p129 = scmp.eq.s32.totalorder %s16, 0
    %p130 = por %p128, %p129
    %p131 = scmp.ne.s32.totalorder %s123, %s125
    %p132 = scmp.eq.s32.totalorder %s21, 1
    %p133 = por %p131, %p132
    %p134 = scmp.ne.s32.totalorder %s125, %s126
    %p135 = scmp.eq.s32.totalorder %s21, 0
    %p136 = por %p134, %p135
    %p137 = scmp.ne.s32.totalorder %s125, %s126
    %p138 = scmp.eq.s32.totalorder %s22, 1
    %p139 = por %p137, %p138
    %p141 = scmp.ne.s32.totalorder %s126, %s140
    %p142 = scmp.eq.s32.totalorder %s22, 0
    %p143 = por %p141, %p142
    %s145 = sadd.s32 %s144, 1
    %p148 = scmp.eq.s32.totalorder %s16, 1
    %p149 = scmp.ne.s32.totalorder %s144, %s146
    %p150 = scmp.eq.s32.totalorder %s16, 0
    %p151 = por %p149, %p150
    %p152 = scmp.ne.s32.totalorder %s144, %s146
    %p153 = scmp.eq.s32.totalorder %s21, 1
    %p154 = por %p152, %p153
    %p155 = scmp.ne.s32.totalorder %s146, %s147
    %p156 = scmp.eq.s32.totalorder %s21, 0
    %p157 = por %p155, %p156
    %p158 = scmp.ne.s32.totalorder %s146, %s147
    %p159 = scmp.eq.s32.totalorder %s22, 1
    %p160 = por %p158, %p159
    %p162 = scmp.ne.s32.totalorder %s147, %s161
    %p163 = scmp.eq.s32.totalorder %s22, 0
    %p164 = por %p162, %p163
    %s166 = sadd.s32 %s165, 1
    %p169 = scmp.eq.s32.totalorder %s16, 1
    %p170 = scmp.ne.s32.totalorder %s165, %s167
    %p171 = scmp.eq.s32.totalorder %s16, 0
    %p172 = por %p170, %p171
    %p173 = scmp.ne.s32.totalorder %s165, %s167
    %p174 = scmp.eq.s32.totalorder %s21, 1
    %p175 = por %p173, %p174
    %p176 = scmp.ne.s32.totalorder %s167, %s168
    %p177 = scmp.eq.s32.totalorder %s21, 0
    %p178 = por %p176, %p177
    %p179 = scmp.ne.s32.totalorder %s167, %s168
    %p180 = scmp.eq.s32.totalorder %s22, 1
    %p181 = por %p179, %p180
    %p183 = scmp.ne.s32.totalorder %s168, %s182
    %p184 = scmp.eq.s32.totalorder %s22, 0
    %p185 = por %p183, %p184
    %s187 = sadd.s32 %s186, 1
    %p190 = scmp.eq.s32.totalorder %s16, 1
    %p191 = scmp.ne.s32.totalorder %s186, %s188
    %p192 = scmp.eq.s32.totalorder %s16, 0
    %p193 = por %p191, %p192
    %p194 = scmp.ne.s32.totalorder %s186, %s188
    %p195 = scmp.eq.s32.totalorder %s21, 1
    %p196 = por %p194, %p195
    %p197 = scmp.ne.s32.totalorder %s188, %s189
    %p198 = scmp.eq.s32.totalorder %s21, 0
    %p199 = por %p197, %p198
    %p200 = scmp.ne.s32.totalorder %s188, %s189
    %p201 = scmp.eq.s32.totalorder %s22, 1
    %p202 = por %p200, %p201
    %p204 = scmp.ne.s32.totalorder %s189, %s203
    %p205 = scmp.eq.s32.totalorder %s22, 0
    %p206 = por %p204, %p205
    %s208 = sadd.s32 %s207, 1
    %p211 = scmp.eq.s32.totalorder %s16, 1
    %p212 = scmp.ne.s32.totalorder %s207, %s209
    %p213 = scmp.eq.s32.totalorder %s16, 0
    %p214 = por %p212, %p213
    %p215 = scmp.ne.s32.totalorder %s207, %s209
    %p216 = scmp.eq.s32.totalorder %s21, 1
    %p217 = por %p215, %p216
    %p218 = scmp.ne.s32.totalorder %s209, %s210
    %p219 = scmp.eq.s32.totalorder %s21, 0
    %p220 = por %p218, %p219
    %p221 = scmp.ne.s32.totalorder %s209, %s210
    %p222 = scmp.eq.s32.totalorder %s22, 1
    %p223 = por %p221, %p222
    %p225 = scmp.ne.s32.totalorder %s210, %s224
    %p226 = scmp.eq.s32.totalorder %s22, 0
    %p227 = por %p225, %p226
    %s229 = sadd.s32 %s228, 1
    %p232 = scmp.eq.s32.totalorder %s16, 1
    %p233 = scmp.ne.s32.totalorder %s228, %s230
    %p234 = scmp.eq.s32.totalorder %s16, 0
    %p235 = por %p233, %p234
    %p236 = scmp.ne.s32.totalorder %s228, %s230
    %p237 = scmp.eq.s32.totalorder %s21, 1
    %p238 = por %p236, %p237
    %p239 = scmp.ne.s32.totalorder %s230, %s231
    %p240 = scmp.eq.s32.totalorder %s21, 0
    %p241 = por %p239, %p240
    %p242 = scmp.ne.s32.totalorder %s230, %s231
    %p243 = scmp.eq.s32.totalorder %s22, 1
    %p244 = por %p242, %p243
    %p246 = scmp.ne.s32.totalorder %s231, %s245
    %p247 = scmp.eq.s32.totalorder %s22, 0
    %p248 = por %p246, %p247
    %s249 = ssub.s32 %s16, %s23
    %p250 = scmp.eq.s32.totalorder %s249, 0
    %s252 = sadd.s32 %s251, 1
    %s253 = scalar_select %p250, %s251, %s252
    %p256 = pneg %p250
    %p257 = scmp.eq.s32.totalorder %s16, 1
    %p258 = por %p256, %p257
    %p259 = scmp.ne.s32.totalorder %s251, %s254
    %p260 = scmp.eq.s32.totalorder %s16, 0
    %p261 = por %p259, %p260
    %p262 = scmp.ne.s32.totalorder %s251, %s254
    %p263 = scmp.eq.s32.totalorder %s21, 1
    %p264 = por %p262, %p263
    %p265 = scmp.ne.s32.totalorder %s254, %s255
    %p266 = scmp.eq.s32.totalorder %s21, 0
    %p267 = por %p265, %p266
    %p268 = scmp.ne.s32.totalorder %s254, %s255
    %p269 = scmp.eq.s32.totalorder %s22, 1
    %p270 = por %p268, %p269
    %p272 = scmp.ne.s32.totalorder %s255, %s271
    %p273 = scmp.eq.s32.totalorder %s22, 0
    %p274 = por %p272, %p273
    %p275 = scmp.le.s32.totalorder 1, %s16
    %p276 = scmp.lt.s32.totalorder %s16, 3
    %p277 = pnand %p275, %p276
    %p278 = pneg %p277
    // Predicated region
    $region9: #{tpu_custom_call.1} parent=5 // pred_check
      _
    $region10: #{tpu_custom_call.1} parent=5 // pred_check_branch
      %280 = sbr.rel (%p277) target = $region12
    $region11: #{tpu_custom_call.1} parent=5 // pred_region
      %s281 = ssub.s32 %s16, 1
      // Predicated region
      $region13: #{tpu_custom_call.1} parent=11 // pred_check
        %p282 = pneg %p115
      $region14: #{tpu_custom_call.1} parent=11 // pred_check_branch
        %284 = sbr.rel (%p282) target = $region16
      $region15: #{tpu_custom_call.1} parent=11 // pred_region
        _
      $region16: #{tpu_custom_call.1} parent=11 // pred_fallthru
        _
      // Predicated region
      $region17: #{tpu_custom_call.1} parent=11 // pred_check
        %p285 = pneg %p136
      $region18: #{tpu_custom_call.1} parent=11 // pred_check_branch
        %287 = sbr.rel (%p285) target = $region20
      $region19: #{tpu_custom_call.1} parent=11 // pred_region
        _
      $region20: #{tpu_custom_call.1} parent=11 // pred_fallthru
        _
      // Predicated region
      $region21: #{tpu_custom_call.1} parent=11 // pred_check
        %p288 = pneg %p157
      $region22: #{tpu_custom_call.1} parent=11 // pred_check_branch
        %290 = sbr.rel (%p288) target = $region24
      $region23: #{tpu_custom_call.1} parent=11 // pred_region
        _
      $region24: #{tpu_custom_call.1} parent=11 // pred_fallthru
        _
      // Predicated region
      $region25: #{tpu_custom_call.1} parent=11 // pred_check
        %p291 = pneg %p178
      $region26: #{tpu_custom_call.1} parent=11 // pred_check_branch
        %293 = sbr.rel (%p291) target = $region28
      $region27: #{tpu_custom_call.1} parent=11 // pred_region
        _
      $region28: #{tpu_custom_call.1} parent=11 // pred_fallthru
        _
      // Predicated region
      $region29: #{tpu_custom_call.1} parent=11 // pred_check
        %p294 = pneg %p199
      $region30: #{tpu_custom_call.1} parent=11 // pred_check_branch
        %296 = sbr.rel (%p294) target = $region32
      $region31: #{tpu_custom_call.1} parent=11 // pred_region
        _
      $region32: #{tpu_custom_call.1} parent=11 // pred_fallthru
        _
      // Predicated region
      $region33: #{tpu_custom_call.1} parent=11 // pred_check
        %p297 = pneg %p220
      $region34: #{tpu_custom_call.1} parent=11 // pred_check_branch
        %299 = sbr.rel (%p297) target = $region36
      $region35: #{tpu_custom_call.1} parent=11 // pred_region
        _
      $region36: #{tpu_custom_call.1} parent=11 // pred_fallthru
        _
      // Predicated region
      $region37: #{tpu_custom_call.1} parent=11 // pred_check
        %p300 = pneg %p241
      $region38: #{tpu_custom_call.1} parent=11 // pred_check_branch
        %302 = sbr.rel (%p300) target = $region40
      $region39: #{tpu_custom_call.1} parent=11 // pred_region
        _
      $region40: #{tpu_custom_call.1} parent=11 // pred_fallthru
        _
    $region12: #{tpu_custom_call.1} parent=5 // pred_fallthru
      _
    %p303 = scmp.lt.s32.totalorder %s16, 2
    // Predicated region
    $region41: #{tpu_custom_call.1} parent=5 // pred_check
      %p304 = pneg %p303
    $region42: #{tpu_custom_call.1} parent=5 // pred_check_branch
      %306 = sbr.rel (%p304) target = $region44
    $region43: #{tpu_custom_call.1} parent=5 // pred_region
      // Predicated region
      $region45: #{tpu_custom_call.1} parent=43 // pred_check
        %p307 = pneg %p36
      $region46: #{tpu_custom_call.1} parent=43 // pred_check_branch
        %309 = sbr.rel (%p307) target = $region48
      $region47: #{tpu_custom_call.1} parent=43 // pred_region
        %p310 = scmp.lt.s32.totalorder %s16, 1
        %s311 = scalar_select %p310, %s16, 1
        %s312 = smul.addr %s311, 2
        %s313 = smul.addr %s312, 8
        %s314 = scalar_lea.vmem %s0, %s313
      $region48: #{tpu_custom_call.1} parent=43 // pred_fallthru
        _
      // Predicated region
      $region49: #{tpu_custom_call.1} parent=43 // pred_check
        %p315 = pneg %p62
      $region50: #{tpu_custom_call.1} parent=43 // pred_check_branch
        %317 = sbr.rel (%p315) target = $region52
      $region51: #{tpu_custom_call.1} parent=43 // pred_region
        %p318 = scmp.lt.s32.totalorder %s16, 1
        %s319 = scalar_select %p318, %s16, 1
        %s320 = smul.addr %s319, 8
        %s321 = scalar_lea.vmem %s1, %s320
      $region52: #{tpu_custom_call.1} parent=43 // pred_fallthru
        _
      // Predicated region
      $region53: #{tpu_custom_call.1} parent=43 // pred_check
        %p322 = pneg %p88
      $region54: #{tpu_custom_call.1} parent=43 // pred_check_branch
        %324 = sbr.rel (%p322) target = $region56
      $region55: #{tpu_custom_call.1} parent=43 // pred_region
        %p325 = scmp.lt.s32.totalorder %s16, 1
        %s326 = scalar_select %p325, %s16, 1
        %s327 = smul.addr %s326, 3
        %s328 = smul.addr %s327, 8
        %s329 = scalar_lea.vmem %s2, %s328
      $region56: #{tpu_custom_call.1} parent=43 // pred_fallthru
        _
    $region44: #{tpu_custom_call.1} parent=5 // pred_fallthru
      _
    %p330 = scmp.le.s32.totalorder 1, %s16
    %p331 = scmp.lt.s32.totalorder %s16, 3
    %p332 = pnand %p330, %p331
    %p333 = pneg %p332
    // Predicated region
    $region57: #{tpu_custom_call.1} parent=5 // pred_check
      _
    $region58: #{tpu_custom_call.1} parent=5 // pred_check_branch
      %335 = sbr.rel (%p332) target = $region60
    $region59: #{tpu_custom_call.1} parent=5 // pred_region
      %s336 = ssub.s32 %s16, 1
      %p337 = scmp.lt.s32.totalorder %s21, 1
      %s338 = scalar_select %p337, %s21, 1
      %s339 = smul.addr %s338, 2
      %s340 = smul.addr %s339, 8
      %s341 = scalar_lea.vmem %s0, %s340
      %p342 = pneg %p42
      %p343 = pneg %p39
      %p344 = scmp.lt.s32.totalorder %s21, 1
      %s345 = scalar_select %p344, %s21, 1
      %s346 = smul.addr %s345, 8
      %s347 = scalar_lea.vmem %s1, %s346
      %p348 = pneg %p68
      %p349 = pneg %p65
      %p350 = scmp.lt.s32.totalorder %s21, 1
      %s351 = scalar_select %p350, %s21, 1
      %s352 = smul.addr %s351, 3
      %s353 = smul.addr %s352, 8
      %s354 = scalar_lea.vmem %s2, %s353
      %p355 = pneg %p94
      %p356 = pneg %p91
      %p357 = pneg %p115
      %p358 = pneg %p112
      %p359 = pneg %p136
      %p360 = pneg %p133
      %p361 = pneg %p157
      %p362 = pneg %p154
      %p363 = pneg %p178
      %p364 = pneg %p175
      %p365 = pneg %p199
      %p366 = pneg %p196
      %p367 = pneg %p220
      %p368 = pneg %p217
      %p369 = pneg %p241
      %p370 = pneg %p238
      %p371 = pneg %p267
      %p372 = pneg %p264
      %p373 = scmp.lt.s32.totalorder %s21, 1
      %s374 = scalar_select %p373, %s21, 1
      %s375 = smul.addr %s374, 4
      %s376 = smul.addr %s375, 8
      %s377 = scalar_lea.vmem %s10, %s376
      %p378 = scmp.lt.s32.totalorder %s21, 1
      %s379 = scalar_select %p378, %s21, 1
      %s380 = smul.addr %s379, 2
      %s381 = smul.addr %s380, 8
      %s382 = scalar_lea.vmem %s0, %s381
      %p383 = scmp.lt.s32.totalorder %s21, 1
      %s384 = scalar_select %p383, %s21, 1
      %s385 = smul.addr %s384, 8
      %s386 = scalar_lea.vmem %s1, %s385
      %p387 = scmp.lt.s32.totalorder %s21, 1
      %s388 = scalar_select %p387, %s21, 1
      %s389 = smul.addr %s388, 3
      %s390 = smul.addr %s389, 8
      %s391 = scalar_lea.vmem %s2, %s390
      %p392 = scmp.lt.s32.totalorder %s21, 1
      %s393 = scalar_select %p392, %s21, 1
      %s394 = smul.addr %s393, 4
      %s395 = smul.addr %s394, 8
      %s396 = scalar_lea.vmem %s10, %s395
      %v398 = vld [vmem:[%s382] sm:$0x3f]
      %v399 = vld [vmem:[%s382 + $0x8] sm:$0x3f]
      %v400 = vld [vmem:[%s386] sm:$0x3f]
      %v401 = vld [vmem:[%s391] sm:$0xff]
      %v402 = vld [vmem:[%s391 + $0x8] sm:$0xff]
      %v403 = vld [vmem:[%s391 + $0x10] sm:$0xff]
      %v404 = vld [vmem:[%s3] sm:$0xff]
      %v405 = vld [vmem:[%s3 + $0x8] sm:$0x11]
      %vm406 = vcmask 1045504
      %v407 = vsel %vm406, %v398, 0.0
      %v408 = vsel %vm406, %v399, 0.0
      %v409 = vadd.f32 %v407, %v408
      %410 = vadd.xlane.f32.xlu0 %v409
      %v411 = vpop.xlane.xlu0 %410
      %v412 = vrcp.pop 256.0
      %v413 = vmul.f32 %v411, %v412
      %v414 = vmul.f32 %v398, %v398
      %v415 = vmul.f32 %v399, %v399
      %v416 = vsel %vm406, %v414, 0.0
      %v417 = vsel %vm406, %v415, 0.0
      %v418 = vadd.f32 %v416, %v417
      %419 = vadd.xlane.f32.xlu0 %v418
      %v420 = vpop.xlane.xlu0 %419
      %v421 = vmul.f32 %v420, %v412
      %v422 = vmul.f32 %v413, %v413
      %v423 = vsub.f32 %v421, %v422
      %v424 = vmax.f32 %v423, 0.0
      %v425 = vsub.f32 %v398, %v413
      %v426 = vsub.f32 %v399, %v413
      %v427 = vadd.f32 %v424, 1e-05
      %v428 = vrsqrt.pop %v427
      %v429 = vmul.f32 %v425, %v428
      %v430 = vmul.f32 %v426, %v428
      %432 = vset.pattern.permute.xlu0 0
      %433 = vperm.xlu0 %432, %v400
      %v434 = vpop.permute.xlu0 %433
      %v436 = vadd.f32 %v429, %v434
      %v437 = vadd.f32 %v430, %v434
      %v438 = vxor.u32 %v436, 2147483648
      %v439 = vxor.u32 %v437, 2147483648
      %v440 = vmul.f32 %v438, 1.442695
      %v441 = vpow.pop %v440
      %v442 = vmul.f32 %v439, 1.442695
      %v443 = vpow.pop %v442
      %v444 = vadd.f32 %v441, 1.0
      %v445 = vadd.f32 %v443, 1.0
      %v446 = vrcp.pop %v444
      %v447 = vmul.f32 1.0, %v446
      %v448 = vrcp.pop %v445
      %v449 = vmul.f32 1.0, %v448
      %v450 = vmul.f32 %v436, %v447
      %v451 = vmul.f32 %v437, %v449
      %v452 = vpack.c.bf16 %v450, %v450
      %v453 = vpack.c.bf16 %v451, %v451
      %v454 = vld [vmem:[%s5] sm:$0xff]
      %v455 = vld [vmem:[%s5 + $0x8] sm:$0xf]
      %457 = vrot.lane.b32.xlu0 %v453, 17
      %v458 = vpop.permute.xlu0 %457
      %460 = vrot.lane.b32.xlu0 %v452, 17
      %v461 = vpop.permute.xlu0 %460
      %vm462 = vcmask 138240
      %v463 = vsel %vm462, %v461, %v458
      %vm465 = vcmask 138240
      %v468 = vsel %vm465, %v458, %v461
      %v471 = vunpack.c.l.b16 %v404
      %v472 = vunpack.c.h.b16 %v404
      %v473 = vpack.c.b16 %v471, %v471
      %v474 = vpack.c.b16 %v472, %v472
      %v476 = vpack.i.b16 %v473, %v473
      %v478 = vlaneseq
      %v479 = vshrl.u32 %v478, 7
      %v480 = vsub.s32 0, %v479
      %v481 = vrot.slane %v476, %v480
      %v483 = vpack.i.b16 %v474, %v474
      %v485 = vlaneseq
      %v486 = vshrl.u32 %v485, 7
      %v487 = vsub.s32 0, %v486
      %v488 = vrot.slane %v483, %v487
      %v489 = vmul.bf16 %v468, %v481
      %v490 = vmul.bf16 %v463, %v488
      %491 = vrot.lane.b32.xlu0 %v453, 16
      %v492 = vpop.permute.xlu0 %491
      %493 = vrot.lane.b32.xlu0 %v452, 16
      %v494 = vpop.permute.xlu0 %493
      %vm495 = vcmask 130048
      %v496 = vsel %vm495, %v494, %v492
      %vm498 = vcmask 130048
      %v501 = vsel %vm498, %v492, %v494
      %v503 = vshrl.u32 %v473, 16
      %v504 = vpack.i.b16 %v503, %v503
      %v506 = vlaneseq
      %v507 = vshrl.u32 %v506, 7
      %v508 = vsub.s32 0, %v507
      %v509 = vrot.slane %v504, %v508
      %v510 = vshrl.u32 %v474, 16
      %v511 = vpack.i.b16 %v510, %v510
      %v513 = vlaneseq
      %v514 = vshrl.u32 %v513, 7
      %v515 = vsub.s32 0, %v514
      %v516 = vrot.slane %v511, %v515
      %v517 = vmul.bf16 %v501, %v509
      %v518 = vmul.bf16 %v496, %v516
      %519 = vrot.lane.b32.xlu0 %v453, 15
      %v520 = vpop.permute.xlu0 %519
      %521 = vrot.lane.b32.xlu0 %v452, 15
      %v522 = vpop.permute.xlu0 %521
      %vm523 = vcmask 121856
      %v524 = vsel %vm523, %v522, %v520
      %vm526 = vcmask 121856
      %v529 = vsel %vm526, %v520, %v522
      %v531 = vlaneseq
      %v532 = vshrl.u32 %v531, 7
      %v533 = vsub.s32 1, %v532
      %v534 = vrot.slane %v476, %v533
      %v535 = vlaneseq
      %v536 = vshrl.u32 %v535, 7
      %v537 = vsub.s32 1, %v536
      %v538 = vrot.slane %v483, %v537
      %v539 = vmul.bf16 %v529, %v534
      %v540 = vmul.bf16 %v524, %v538
      %541 = vrot.lane.b32.xlu0 %v453, 1
      %v542 = vpop.permute.xlu0 %541
      %543 = vrot.lane.b32.xlu0 %v452, 1
      %v544 = vpop.permute.xlu0 %543
      %vm545 = vcmask 7168
      %v546 = vsel %vm545, %v544, %v542
      %vm548 = vcmask 7168
      %v551 = vsel %vm548, %v542, %v544
      %v553 = vlaneseq
      %v554 = vshrl.u32 %v553, 7
      %v555 = vsub.s32 1, %v554
      %v556 = vrot.slane %v504, %v555
      %v557 = vlaneseq
      %v558 = vshrl.u32 %v557, 7
      %v559 = vsub.s32 1, %v558
      %v560 = vrot.slane %v511, %v559
      %v561 = vmul.bf16 %v551, %v556
      %v562 = vmul.bf16 %v546, %v560
      %563 = vrot.lane.b32.xlu0 %v452, 127
      %v564 = vpop.permute.xlu0 %563
      %565 = vrot.lane.b32.xlu0 %v453, 127
      %v566 = vpop.permute.xlu0 %565
      %vm567 = vcmask 1039360
      %v568 = vsel %vm567, %v564, %v566
      %vm570 = vcmask 1039360
      %v573 = vsel %vm570, %v566, %v564
      %v575 = vlaneseq
      %v576 = vshrl.u32 %v575, 7
      %v577 = vsub.s32 2, %v576
      %v578 = vrot.slane %v504, %v577
      %v579 = vlaneseq
      %v580 = vshrl.u32 %v579, 7
      %v581 = vsub.s32 2, %v580
      %v582 = vrot.slane %v511, %v581
      %v583 = vmul.bf16 %v568, %v578
      %v584 = vmul.bf16 %v573, %v582
      %585 = vrot.lane.b32.xlu0 %v452, 113
      %v586 = vpop.permute.xlu0 %585
      %587 = vrot.lane.b32.xlu0 %v453, 113
      %v588 = vpop.permute.xlu0 %587
      %vm589 = vcmask 924672
      %v590 = vsel %vm589, %v586, %v588
      %vm592 = vcmask 924672
      %v595 = vsel %vm592, %v588, %v586
      %v597 = vlaneseq
      %v598 = vshrl.u32 %v597, 7
      %v599 = vsub.s32 3, %v598
      %v600 = vrot.slane %v476, %v599
      %v601 = vlaneseq
      %v602 = vshrl.u32 %v601, 7
      %v603 = vsub.s32 3, %v602
      %v604 = vrot.slane %v483, %v603
      %v605 = vmul.bf16 %v590, %v600
      %v606 = vmul.bf16 %v595, %v604
      %607 = vrot.lane.b32.xlu0 %v452, 112
      %v608 = vpop.permute.xlu0 %607
      %609 = vrot.lane.b32.xlu0 %v453, 112
      %v610 = vpop.permute.xlu0 %609
      %vm611 = vcmask 916480
      %v612 = vsel %vm611, %v608, %v610
      %vm614 = vcmask 916480
      %v617 = vsel %vm614, %v610, %v608
      %v619 = vlaneseq
      %v620 = vshrl.u32 %v619, 7
      %v621 = vsub.s32 3, %v620
      %v622 = vrot.slane %v504, %v621
      %v623 = vlaneseq
      %v624 = vshrl.u32 %v623, 7
      %v625 = vsub.s32 3, %v624
      %v626 = vrot.slane %v511, %v625
      %v627 = vmul.bf16 %v612, %v622
      %v628 = vmul.bf16 %v617, %v626
      %629 = vrot.lane.b32.xlu0 %v452, 111
      %v630 = vpop.permute.xlu0 %629
      %631 = vrot.lane.b32.xlu0 %v453, 111
      %v632 = vpop.permute.xlu0 %631
      %vm633 = vcmask 908288
      %v634 = vsel %vm633, %v630, %v632
      %vm636 = vcmask 908288
      %v639 = vsel %vm636, %v632, %v630
      %v642 = vunpack.c.l.b16 %v405
      %v643 = vunpack.c.h.b16 %v405
      %v644 = vpack.c.b16 %v642, %v642
      %v645 = vpack.c.b16 %v643, %v643
      %v647 = vpack.i.b16 %v644, %v644
      %v649 = vlaneseq
      %v650 = vshrl.u32 %v649, 7
      %v651 = vsub.s32 0, %v650
      %v652 = vrot.slane %v647, %v651
      %v654 = vpack.i.b16 %v645, %v645
      %v656 = vlaneseq
      %v657 = vshrl.u32 %v656, 7
      %v658 = vsub.s32 0, %v657
      %v659 = vrot.slane %v654, %v658
      %v660 = vmul.bf16 %v634, %v652
      %v661 = vmul.bf16 %v639, %v659
      %v664 = vrot.slane %v517, 7
      %v665 = vrot.slane %v518, 7
      %v668 = vrot.slane %v539, 6
      %v669 = vrot.slane %v540, 6
      %v672 = vrot.slane %v561, 5
      %v673 = vrot.slane %v562, 5
      %v674 = vrot.slane %v452, 4
      %v675 = vrot.slane %v453, 4
      %v678 = vrot.slane %v583, 3
      %v679 = vrot.slane %v584, 3
      %v682 = vrot.slane %v605, 2
      %v683 = vrot.slane %v606, 2
      %v686 = vrot.slane %v627, 1
      %v687 = vrot.slane %v628, 1
      %vm688 = vcmask 1040384
      %v691 = vsel %vm688, %v489, %v664
      %v694 = vsel %vm688, %v490, %v665
      %vm695 = vcmask 1041408
      %v697 = vsel %vm695, %v691, %v668
      %v699 = vsel %vm695, %v694, %v669
      %vm700 = vcmask 1042432
      %v702 = vsel %vm700, %v697, %v672
      %v704 = vsel %vm700, %v699, %v673
      %vm705 = vcmask 1043456
      %v707 = vsel %vm705, %v702, %v674
      %v709 = vsel %vm705, %v704, %v675
      %vm710 = vcmask 1044480
      %v712 = vsel %vm710, %v707, %v678
      %v714 = vsel %vm710, %v709, %v679
      %v716 = vsel %vm406, %v712, %v682
      %v718 = vsel %vm406, %v714, %v683
      %vm719 = vcmask 1046528
      %v721 = vsel %vm719, %v716, %v686
      %v724 = vsel %vm719, %v718, %v687
      %v726 = vld [vmem:[%s4] sm:$0x3]
      %vm727 = vcmask 146432
      %v729 = vsel %vm727, %v726, 0
      %v732 = vsel %vm688, %v660, 0
      %v735 = vsel %vm688, %v661, 0
      %737 = vmatprep.subr.bf16.mxu0 %v724
      %738 = vmatpush1.bf16.msra.mxu0 %v721
      %739 = vmatprep.subr.bf16.mxu0 %v735
      %740 = vmatpush1.bf16.msra.mxu0 %v732
      %741 = vmatprep.subr.bf16.mxu0 0
      %742 = vmatpush1.bf16.msra.mxu0 0
      %743 = vmatprep.subr.bf16.mxu0 0
      %744 = vmatpush1.bf16.msra.mxu0 0
      %745 = vmatprep.subr.bf16.mxu0 0
      %746 = vmatpush1.bf16.msra.mxu0 0
      %747 = vmatprep.subr.bf16.mxu0 0
      %748 = vmatpush1.bf16.msra.mxu0 0
      %749 = vmatprep.subr.bf16.mxu0 0
      %750 = vmatpush1.bf16.msra.mxu0 0
      %751 = vmatprep.subr.bf16.mxu0 0
      %752 = vmatpush1.bf16.msra.mxu0 0
      %753 = vmatprep.subr.bf16.mxu0 0
      %754 = vmatpush1.bf16.msra.mxu0 0
      %755 = vmatprep.subr.bf16.mxu0 0
      %756 = vmatpush1.bf16.msra.mxu0 0
      %757 = vmatprep.subr.bf16.mxu0 0
      %758 = vmatpush1.bf16.msra.mxu0 0
      %759 = vmatprep.subr.bf16.mxu0 0
      %760 = vmatpush1.bf16.msra.mxu0 0
      %761 = vmatprep.subr.bf16.mxu0 0
      %762 = vmatpush1.bf16.msra.mxu0 0
      %763 = vmatprep.subr.bf16.mxu0 0
      %764 = vmatpush1.bf16.msra.mxu0 0
      %765 = vmatprep.subr.bf16.mxu0 0
      %766 = vmatpush1.bf16.msra.mxu0 0
      %767 = vmatprep.subr.bf16.mxu0 0
      %768 = vmatpush1.bf16.msra.mxu0 0
      %769 = vmatprep.mubr.bf16.mxu0 0
      %770 = vmatmul.mubr.bf16.gmra.mrb[0].mxu0 %v729
      %v771 = vpop.f32.mrb[0].mxu0
      %v772 = vadd.f32 0.0, %v771
      %v773 = vpop.f32.mrb[0].mxu0
      %v774 = vadd.f32 0.0, %v773
      %v775 = vpop.f32.mrb[0].mxu0
      %v776 = vpop.f32.mrb[0].mxu0
      %777 = vdwg.mxu0
      %v780 = vrot.slane %v489, 1
      %v781 = vrot.slane %v490, 1
      %v782 = vrot.slane %v539, 7
      %v783 = vrot.slane %v540, 7
      %v784 = vrot.slane %v561, 6
      %v785 = vrot.slane %v562, 6
      %v786 = vrot.slane %v452, 5
      %v787 = vrot.slane %v453, 5
      %v788 = vrot.slane %v583, 4
      %v789 = vrot.slane %v584, 4
      %v790 = vrot.slane %v605, 3
      %v791 = vrot.slane %v606, 3
      %v792 = vrot.slane %v627, 2
      %v793 = vrot.slane %v628, 2
      %v796 = vrot.slane %v660, 1
      %v797 = vrot.slane %v661, 1
      %v800 = vsel %vm688, %v780, %v517
      %v803 = vsel %vm688, %v781, %v518
      %v805 = vsel %vm695, %v800, %v782
      %v807 = vsel %vm695, %v803, %v783
      %v809 = vsel %vm700, %v805, %v784
      %v811 = vsel %vm700, %v807, %v785
      %v813 = vsel %vm705, %v809, %v786
      %v815 = vsel %vm705, %v811, %v787
      %v817 = vsel %vm710, %v813, %v788
      %v819 = vsel %vm710, %v815, %v789
      %v821 = vsel %vm406, %v817, %v790
      %v823 = vsel %vm406, %v819, %v791
      %v825 = vsel %vm719, %v821, %v792
      %v828 = vsel %vm719, %v823, %v793
      %s830 = scalar_lea.vmem %s4, 2
      %v831 = vld [vmem:[%s830] sm:$0x3]
      %v833 = vsel %vm727, %v831, 0
      %v836 = vsel %vm688, %v796, 0
      %v839 = vsel %vm688, %v797, 0
      %841 = vmatprep.subr.bf16.mxu0 %v828
      %842 = vmatpush1.bf16.msra.mxu0 %v825
      %843 = vmatprep.subr.bf16.mxu0 %v839
      %844 = vmatpush1.bf16.msra.mxu0 %v836
      %845 = vmatprep.subr.bf16.mxu0 0
      %846 = vmatpush1.bf16.msra.mxu0 0
      %847 = vmatprep.subr.bf16.mxu0 0
      %848 = vmatpush1.bf16.msra.mxu0 0
      %849 = vmatprep.subr.bf16.mxu0 0
      %850 = vmatpush1.bf16.msra.mxu0 0
      %851 = vmatprep.subr.bf16.mxu0 0
      %852 = vmatpush1.bf16.msra.mxu0 0
      %853 = vmatprep.subr.bf16.mxu0 0
      %854 = vmatpush1.bf16.msra.mxu0 0
      %855 = vmatprep.subr.bf16.mxu0 0
      %856 = vmatpush1.bf16.msra.mxu0 0
      %857 = vmatprep.subr.bf16.mxu0 0
      %858 = vmatpush1.bf16.msra.mxu0 0
      %859 = vmatprep.subr.bf16.mxu0 0
      %860 = vmatpush1.bf16.msra.mxu0 0
      %861 = vmatprep.subr.bf16.mxu0 0
      %862 = vmatpush1.bf16.msra.mxu0 0
      %863 = vmatprep.subr.bf16.mxu0 0
      %864 = vmatpush1.bf16.msra.mxu0 0
      %865 = vmatprep.subr.bf16.mxu0 0
      %866 = vmatpush1.bf16.msra.mxu0 0
      %867 = vmatprep.subr.bf16.mxu0 0
      %868 = vmatpush1.bf16.msra.mxu0 0
      %869 = vmatprep.subr.bf16.mxu0 0
      %870 = vmatpush1.bf16.msra.mxu0 0
      %871 = vmatprep.subr.bf16.mxu0 0
      %872 = vmatpush1.bf16.msra.mxu0 0
      %873 = vmatprep.mubr.bf16.mxu0 0
      %874 = vmatmul.mubr.bf16.gmra.mrb[0].mxu0 %v833
      %v875 = vpop.f32.mrb[0].mxu0
      %v876 = vadd.f32 0.0, %v875
      %v877 = vpop.f32.mrb[0].mxu0
      %v878 = vadd.f32 0.0, %v877
      %v879 = vpop.f32.mrb[0].mxu0
      %v880 = vpop.f32.mrb[0].mxu0
      %881 = vdwg.mxu0
      %v882 = vrot.slane %v489, 2
      %v883 = vrot.slane %v490, 2
      %v884 = vrot.slane %v517, 1
      %v885 = vrot.slane %v518, 1
      %v886 = vrot.slane %v561, 7
      %v887 = vrot.slane %v562, 7
      %v888 = vrot.slane %v452, 6
      %v889 = vrot.slane %v453, 6
      %v890 = vrot.slane %v583, 5
      %v891 = vrot.slane %v584, 5
      %v892 = vrot.slane %v605, 4
      %v893 = vrot.slane %v606, 4
      %v894 = vrot.slane %v627, 3
      %v895 = vrot.slane %v628, 3
      %v896 = vrot.slane %v660, 2
      %v897 = vrot.slane %v661, 2
      %v900 = vsel %vm688, %v882, %v884
      %v903 = vsel %vm688, %v883, %v885
      %v905 = vsel %vm695, %v900, %v539
      %v907 = vsel %vm695, %v903, %v540
      %v909 = vsel %vm700, %v905, %v886
      %v911 = vsel %vm700, %v907, %v887
      %v913 = vsel %vm705, %v909, %v888
      %v915 = vsel %vm705, %v911, %v889
      %v917 = vsel %vm710, %v913, %v890
      %v919 = vsel %vm710, %v915, %v891
      %v921 = vsel %vm406, %v917, %v892
      %v923 = vsel %vm406, %v919, %v893
      %v925 = vsel %vm719, %v921, %v894
      %v928 = vsel %vm719, %v923, %v895
      %s930 = scalar_lea.vmem %s4, 4
      %v931 = vld [vmem:[%s930] sm:$0x3]
      %v933 = vsel %vm727, %v931, 0
      %v936 = vsel %vm688, %v896, 0
      %v939 = vsel %vm688, %v897, 0
      %941 = vmatprep.subr.bf16.mxu0 %v928
      %942 = vmatpush1.bf16.msra.mxu0 %v925
      %943 = vmatprep.subr.bf16.mxu0 %v939
      %944 = vmatpush1.bf16.msra.mxu0 %v936
      %945 = vmatprep.subr.bf16.mxu0 0
      %946 = vmatpush1.bf16.msra.mxu0 0
      %947 = vmatprep.subr.bf16.mxu0 0
      %948 = vmatpush1.bf16.msra.mxu0 0
      %949 = vmatprep.subr.bf16.mxu0 0
      %950 = vmatpush1.bf16.msra.mxu0 0
      %951 = vmatprep.subr.bf16.mxu0 0
      %952 = vmatpush1.bf16.msra.mxu0 0
      %953 = vmatprep.subr.bf16.mxu0 0
      %954 = vmatpush1.bf16.msra.mxu0 0
      %955 = vmatprep.subr.bf16.mxu0 0
      %956 = vmatpush1.bf16.msra.mxu0 0
      %957 = vmatprep.subr.bf16.mxu0 0
      %958 = vmatpush1.bf16.msra.mxu0 0
      %959 = vmatprep.subr.bf16.mxu0 0
      %960 = vmatpush1.bf16.msra.mxu0 0
      %961 = vmatprep.subr.bf16.mxu0 0
      %962 = vmatpush1.bf16.msra.mxu0 0
      %963 = vmatprep.subr.bf16.mxu0 0
      %964 = vmatpush1.bf16.msra.mxu0 0
      %965 = vmatprep.subr.bf16.mxu0 0
      %966 = vmatpush1.bf16.msra.mxu0 0
      %967 = vmatprep.subr.bf16.mxu0 0
      %968 = vmatpush1.bf16.msra.mxu0 0
      %969 = vmatprep.subr.bf16.mxu0 0
      %970 = vmatpush1.bf16.msra.mxu0 0
      %971 = vmatprep.subr.bf16.mxu0 0
      %972 = vmatpush1.bf16.msra.mxu0 0
      %973 = vmatprep.mubr.bf16.mxu0 0
      %974 = vmatmul.mubr.bf16.gmra.mrb[0].mxu0 %v933
      %v975 = vpop.f32.mrb[0].mxu0
      %v976 = vadd.f32 0.0, %v975
      %v977 = vpop.f32.mrb[0].mxu0
      %v978 = vadd.f32 0.0, %v977
      %v979 = vpop.f32.mrb[0].mxu0
      %v980 = vpop.f32.mrb[0].mxu0
      %981 = vdwg.mxu0
      %v984 = vrot.slane %v876, 4
      %v985 = vrot.slane %v878, 4
      %v988 = vsel %vm705, %v772, %v984
      %v989 = vsel %vm705, %v774, %v985
      %991 = vset.pattern.permute.xlu0 0
      %992 = vperm.xlu0 %991, %v454
      %v993 = vpop.permute.xlu0 %992
      %996 = vset.pattern.permute.xlu0 0
      %997 = vperm.xlu0 %996, %v455
      %v998 = vpop.permute.xlu0 %997
      %v1000 = vadd.f32 %v988, %v993
      %v1001 = vadd.f32 %v989, %v993
      %v1002 = vadd.f32 %v976, %v998
      %v1003 = vadd.f32 %v978, %v998
      %v1004 = vadd.f32 %v401, 1.0
      %v1005 = vadd.f32 %v402, 1.0
      %1007 = vset.pattern.permute.xlu0 0
      %1008 = vperm.xlu0 %1007, %v1004
      %v1009 = vpop.permute.xlu0 %1008
      %1012 = vset.pattern.permute.xlu0 0
      %1013 = vperm.xlu0 %1012, %v1005
      %v1014 = vpop.permute.xlu0 %1013
      %v1016 = vmul.f32 %v1009, %v1000
      %v1017 = vmul.f32 %v1009, %v1001
      %v1018 = vmul.f32 %v1014, %v1002
      %v1019 = vmul.f32 %v1014, %v1003
      %1021 = vset.pattern.permute.xlu0 0
      %1022 = vperm.xlu0 %1021, %v402
      %v1023 = vpop.permute.xlu0 %1022
      %1025 = vset.pattern.permute.xlu0 0
      %1026 = vperm.xlu0 %1025, %v403
      %v1027 = vpop.permute.xlu0 %1026
      %v1028 = vrot.slane %v1023, 4
      %v1029 = vrot.slane %v1027, 4
      %v1030 = vsel %vm705, %v1028, %v1029
      %v1033 = vadd.f32 %v1016, %v1030
      %v1034 = vadd.f32 %v1017, %v1030
      %v1035 = vadd.f32 %v1018, %v1029
      %v1036 = vadd.f32 %v1019, %v1029
      %v1037 = vadd.f32 %v1033, %v1034
      %1038 = vadd.xlane.f32.xlu0 %v1037
      %v1039 = vpop.xlane.xlu0 %1038
      %v1040 = vsel %vm705, %v1035, 0.0
      %v1041 = vsel %vm705, %v1036, 0.0
      %v1042 = vadd.f32 %v1040, %v1041
      %1043 = vadd.xlane.f32.xlu0 %v1042
      %v1044 = vpop.xlane.xlu0 %1043
      %v1045 = vmul.f32 %v1039, %v412
      %v1046 = vmul.f32 %v1044, %v412
      %v1047 = vmul.f32 %v1033, %v1033
      %v1048 = vmul.f32 %v1034, %v1034
      %v1049 = vmul.f32 %v1035, %v1035
      %v1050 = vmul.f32 %v1036, %v1036
      %v1051 = vadd.f32 %v1047, %v1048
      %1052 = vadd.xlane.f32.xlu0 %v1051
      %v1053 = vpop.xlane.xlu0 %1052
      %v1054 = vsel %vm705, %v1049, 0.0
      %v1055 = vsel %vm705, %v1050, 0.0
      %v1056 = vadd.f32 %v1054, %v1055
      %1057 = vadd.xlane.f32.xlu0 %v1056
      %v1058 = vpop.xlane.xlu0 %1057
      %v1059 = vmul.f32 %v1053, %v412
      %v1060 = vmul.f32 %v1058, %v412
      %v1061 = vmul.f32 %v1045, %v1045
      %v1062 = vmul.f32 %v1046, %v1046
      %v1063 = vsub.f32 %v1059, %v1061
      %v1064 = vsub.f32 %v1060, %v1062
      %v1065 = vmax.f32 %v1063, 0.0
      %v1066 = vmax.f32 %v1064, 0.0
      %v1067 = vsub.f32 %v1033, %v1045
      %v1068 = vsub.f32 %v1034, %v1045
      %v1069 = vsub.f32 %v1035, %v1046
      %v1070 = vsub.f32 %v1036, %v1046
      %v1071 = vadd.f32 %v1065, 1e-05
      %v1072 = vadd.f32 %v1066, 1e-05
      %v1073 = vrsqrt.pop %v1071
      %v1074 = vrsqrt.pop %v1072
      %v1075 = vmul.f32 %v1067, %v1073
      %v1076 = vmul.f32 %v1068, %v1073
      %v1077 = vmul.f32 %v1069, %v1074
      %v1078 = vmul.f32 %v1070, %v1074
      %v1079 = vxor.u32 %v1075, 2147483648
      %v1080 = vxor.u32 %v1076, 2147483648
      %v1081 = vxor.u32 %v1077, 2147483648
      %v1082 = vxor.u32 %v1078, 2147483648
      %v1083 = vmul.f32 %v1079, 1.442695
      %v1084 = vpow.pop %v1083
      %v1085 = vmul.f32 %v1080, 1.442695
      %v1086 = vpow.pop %v1085
      %v1087 = vmul.f32 %v1081, 1.442695
      %v1088 = vpow.pop %v1087
      %v1089 = vmul.f32 %v1082, 1.442695
      %v1090 = vpow.pop %v1089
      %v1091 = vadd.f32 %v1084, 1.0
      %v1092 = vadd.f32 %v1086, 1.0
      %v1093 = vadd.f32 %v1088, 1.0
      %v1094 = vadd.f32 %v1090, 1.0
      %v1095 = vrcp.pop %v1091
      %v1096 = vmul.f32 1.0, %v1095
      %v1097 = vrcp.pop %v1092
      %v1098 = vmul.f32 1.0, %v1097
      %v1099 = vrcp.pop %v1093
      %v1100 = vmul.f32 1.0, %v1099
      %v1101 = vrcp.pop %v1094
      %v1102 = vmul.f32 1.0, %v1101
      %v1103 = vmul.f32 %v1075, %v1096
      %v1104 = vmul.f32 %v1076, %v1098
      %v1105 = vmul.f32 %v1077, %v1100
      %v1106 = vmul.f32 %v1078, %v1102
      %v1107 = vpack.c.bf16 %v1105, %v1103
      %v1108 = vpack.c.bf16 %v1106, %v1104
      %v1109 = vld [vmem:[%s7] sm:$0xff]
      %v1110 = vld [vmem:[%s7 + $0x8] sm:$0xf]
      %1112 = vrot.lane.b32.xlu0 %v1108, 17
      %v1113 = vpop.permute.xlu0 %1112
      %1115 = vrot.lane.b32.xlu0 %v1107, 17
      %v1116 = vpop.permute.xlu0 %1115
      %v1117 = vsel %vm462, %v1116, %v1113
      %v1121 = vsel %vm465, %v1113, %v1116
      %v1123 = vmul.bf16 %v1121, %v481
      %v1124 = vmul.bf16 %v1117, %v488
      %1125 = vrot.lane.b32.xlu0 %v1108, 16
      %v1126 = vpop.permute.xlu0 %1125
      %1127 = vrot.lane.b32.xlu0 %v1107, 16
      %v1128 = vpop.permute.xlu0 %1127
      %v1129 = vsel %vm495, %v1128, %v1126
      %v1133 = vsel %vm498, %v1126, %v1128
      %v1135 = vmul.bf16 %v1133, %v509
      %v1136 = vmul.bf16 %v1129, %v516
      %1137 = vrot.lane.b32.xlu0 %v1108, 15
      %v1138 = vpop.permute.xlu0 %1137
      %1139 = vrot.lane.b32.xlu0 %v1107, 15
      %v1140 = vpop.permute.xlu0 %1139
      %v1141 = vsel %vm523, %v1140, %v1138
      %v1145 = vsel %vm526, %v1138, %v1140
      %v1147 = vmul.bf16 %v1145, %v534
      %v1148 = vmul.bf16 %v1141, %v538
      %1149 = vrot.lane.b32.xlu0 %v1108, 1
      %v1150 = vpop.permute.xlu0 %1149
      %1151 = vrot.lane.b32.xlu0 %v1107, 1
      %v1152 = vpop.permute.xlu0 %1151
      %v1153 = vsel %vm545, %v1152, %v1150
      %v1157 = vsel %vm548, %v1150, %v1152
      %v1159 = vmul.bf16 %v1157, %v556
      %v1160 = vmul.bf16 %v1153, %v560
      %1161 = vrot.lane.b32.xlu0 %v1107, 127
      %v1162 = vpop.permute.xlu0 %1161
      %1163 = vrot.lane.b32.xlu0 %v1108, 127
      %v1164 = vpop.permute.xlu0 %1163
      %v1165 = vsel %vm567, %v1162, %v1164
      %v1169 = vsel %vm570, %v1164, %v1162
      %v1171 = vmul.bf16 %v1165, %v578
      %v1172 = vmul.bf16 %v1169, %v582
      %1173 = vrot.lane.b32.xlu0 %v1107, 113
      %v1174 = vpop.permute.xlu0 %1173
      %1175 = vrot.lane.b32.xlu0 %v1108, 113
      %v1176 = vpop.permute.xlu0 %1175
      %v1177 = vsel %vm589, %v1174, %v1176
      %v1181 = vsel %vm592, %v1176, %v1174
      %v1183 = vmul.bf16 %v1177, %v600
      %v1184 = vmul.bf16 %v1181, %v604
      %1185 = vrot.lane.b32.xlu0 %v1107, 112
      %v1186 = vpop.permute.xlu0 %1185
      %1187 = vrot.lane.b32.xlu0 %v1108, 112
      %v1188 = vpop.permute.xlu0 %1187
      %v1189 = vsel %vm611, %v1186, %v1188
      %v1193 = vsel %vm614, %v1188, %v1186
      %v1195 = vmul.bf16 %v1189, %v622
      %v1196 = vmul.bf16 %v1193, %v626
      %1197 = vrot.lane.b32.xlu0 %v1107, 111
      %v1198 = vpop.permute.xlu0 %1197
      %1199 = vrot.lane.b32.xlu0 %v1108, 111
      %v1200 = vpop.permute.xlu0 %1199
      %v1201 = vsel %vm633, %v1198, %v1200
      %v1205 = vsel %vm636, %v1200, %v1198
      %v1207 = vmul.bf16 %v1201, %v652
      %v1208 = vmul.bf16 %v1205, %v659
      %v1211 = vrot.slane %v1135, 6
      %v1212 = vrot.slane %v1136, 6
      %v1215 = vrot.slane %v1147, 4
      %v1216 = vrot.slane %v1148, 4
      %v1219 = vrot.slane %v1159, 2
      %v1220 = vrot.slane %v1160, 2
      %v1223 = vrot.slane %v1171, 6
      %v1224 = vrot.slane %v1172, 6
      %v1227 = vrot.slane %v1183, 4
      %v1228 = vrot.slane %v1184, 4
      %v1231 = vrot.slane %v1195, 2
      %v1232 = vrot.slane %v1196, 2
      %v1235 = vsel %vm695, %v1123, %v1211
      %v1238 = vsel %vm695, %v1124, %v1212
      %v1240 = vsel %vm705, %v1235, %v1215
      %v1242 = vsel %vm705, %v1238, %v1216
      %v1244 = vsel %vm406, %v1240, %v1219
      %v1247 = vsel %vm406, %v1242, %v1220
      %v1251 = vsel %vm695, %v1107, %v1223
      %v1254 = vsel %vm695, %v1108, %v1224
      %v1256 = vsel %vm705, %v1251, %v1227
      %v1258 = vsel %vm705, %v1254, %v1228
      %v1260 = vsel %vm406, %v1256, %v1231
      %v1263 = vsel %vm406, %v1258, %v1232
      %v1265 = vld [vmem:[%s6] sm:$0x3]
      %vm1266 = vcmask 293888
      %v1268 = vsel %vm1266, %v1265, 0
      %v1271 = vsel %vm695, %v1207, 0
      %v1274 = vsel %vm695, %v1208, 0
      %1276 = vmatprep.subr.bf16.mxu0 %v1247
      %1277 = vmatpush1.bf16.msra.mxu0 %v1244
      %1278 = vmatprep.subr.bf16.mxu0 %v1263
      %1279 = vmatpush1.bf16.msra.mxu0 %v1260
      %1280 = vmatprep.subr.bf16.mxu0 %v1274
      %1281 = vmatpush1.bf16.msra.mxu0 %v1271
      %1282 = vmatprep.subr.bf16.mxu0 0
      %1283 = vmatpush1.bf16.msra.mxu0 0
      %1284 = vmatprep.subr.bf16.mxu0 0
      %1285 = vmatpush1.bf16.msra.mxu0 0
      %1286 = vmatprep.subr.bf16.mxu0 0
      %1287 = vmatpush1.bf16.msra.mxu0 0
      %1288 = vmatprep.subr.bf16.mxu0 0
      %1289 = vmatpush1.bf16.msra.mxu0 0
      %1290 = vmatprep.subr.bf16.mxu0 0
      %1291 = vmatpush1.bf16.msra.mxu0 0
      %1292 = vmatprep.subr.bf16.mxu0 0
      %1293 = vmatpush1.bf16.msra.mxu0 0
      %1294 = vmatprep.subr.bf16.mxu0 0
      %1295 = vmatpush1.bf16.msra.mxu0 0
      %1296 = vmatprep.subr.bf16.mxu0 0
      %1297 = vmatpush1.bf16.msra.mxu0 0
      %1298 = vmatprep.subr.bf16.mxu0 0
      %1299 = vmatpush1.bf16.msra.mxu0 0
      %1300 = vmatprep.subr.bf16.mxu0 0
      %1301 = vmatpush1.bf16.msra.mxu0 0
      %1302 = vmatprep.subr.bf16.mxu0 0
      %1303 = vmatpush1.bf16.msra.mxu0 0
      %1304 = vmatprep.subr.bf16.mxu0 0
      %1305 = vmatpush1.bf16.msra.mxu0 0
      %1306 = vmatprep.subr.bf16.mxu0 0
      %1307 = vmatpush1.bf16.msra.mxu0 0
      %1308 = vmatprep.mubr.bf16.mxu0 0
      %1309 = vmatmul.mubr.bf16.gmra.mrb[0].mxu0 %v1268
      %v1310 = vpop.f32.mrb[0].mxu0
      %v1311 = vadd.f32 0.0, %v1310
      %v1312 = vpop.f32.mrb[0].mxu0
      %v1313 = vadd.f32 0.0, %v1312
      %v1314 = vpop.f32.mrb[0].mxu0
      %v1315 = vpop.f32.mrb[0].mxu0
      %1316 = vdwg.mxu0
      %v1319 = vrot.slane %v1123, 2
      %v1320 = vrot.slane %v1124, 2
      %v1321 = vrot.slane %v1147, 6
      %v1322 = vrot.slane %v1148, 6
      %v1323 = vrot.slane %v1159, 4
      %v1324 = vrot.slane %v1160, 4
      %v1325 = vrot.slane %v1107, 2
      %v1326 = vrot.slane %v1108, 2
      %v1327 = vrot.slane %v1183, 6
      %v1328 = vrot.slane %v1184, 6
      %v1329 = vrot.slane %v1195, 4
      %v1330 = vrot.slane %v1196, 4
      %v1333 = vrot.slane %v1207, 2
      %v1334 = vrot.slane %v1208, 2
      %v1337 = vsel %vm695, %v1319, %v1135
      %v1340 = vsel %vm695, %v1320, %v1136
      %v1342 = vsel %vm705, %v1337, %v1321
      %v1344 = vsel %vm705, %v1340, %v1322
      %v1346 = vsel %vm406, %v1342, %v1323
      %v1349 = vsel %vm406, %v1344, %v1324
      %v1353 = vsel %vm695, %v1325, %v1171
      %v1356 = vsel %vm695, %v1326, %v1172
      %v1358 = vsel %vm705, %v1353, %v1327
      %v1360 = vsel %vm705, %v1356, %v1328
      %v1362 = vsel %vm406, %v1358, %v1329
      %v1365 = vsel %vm406, %v1360, %v1330
      %s1367 = scalar_lea.vmem %s6, 2
      %v1368 = vld [vmem:[%s1367] sm:$0x3]
      %v1370 = vsel %vm1266, %v1368, 0
      %v1373 = vsel %vm695, %v1333, 0
      %v1376 = vsel %vm695, %v1334, 0
      %1378 = vmatprep.subr.bf16.mxu0 %v1349
      %1379 = vmatpush1.bf16.msra.mxu0 %v1346
      %1380 = vmatprep.subr.bf16.mxu0 %v1365
      %1381 = vmatpush1.bf16.msra.mxu0 %v1362
      %1382 = vmatprep.subr.bf16.mxu0 %v1376
      %1383 = vmatpush1.bf16.msra.mxu0 %v1373
      %1384 = vmatprep.subr.bf16.mxu0 0
      %1385 = vmatpush1.bf16.msra.mxu0 0
      %1386 = vmatprep.subr.bf16.mxu0 0
      %1387 = vmatpush1.bf16.msra.mxu0 0
      %1388 = vmatprep.subr.bf16.mxu0 0
      %1389 = vmatpush1.bf16.msra.mxu0 0
      %1390 = vmatprep.subr.bf16.mxu0 0
      %1391 = vmatpush1.bf16.msra.mxu0 0
      %1392 = vmatprep.subr.bf16.mxu0 0
      %1393 = vmatpush1.bf16.msra.mxu0 0
      %1394 = vmatprep.subr.bf16.mxu0 0
      %1395 = vmatpush1.bf16.msra.mxu0 0
      %1396 = vmatprep.subr.bf16.mxu0 0
      %1397 = vmatpush1.bf16.msra.mxu0 0
      %1398 = vmatprep.subr.bf16.mxu0 0
      %1399 = vmatpush1.bf16.msra.mxu0 0
      %1400 = vmatprep.subr.bf16.mxu0 0
      %1401 = vmatpush1.bf16.msra.mxu0 0
      %1402 = vmatprep.subr.bf16.mxu0 0
      %1403 = vmatpush1.bf16.msra.mxu0 0
      %1404 = vmatprep.subr.bf16.mxu0 0
      %1405 = vmatpush1.bf16.msra.mxu0 0
      %1406 = vmatprep.subr.bf16.mxu0 0
      %1407 = vmatpush1.bf16.msra.mxu0 0
      %1408 = vmatprep.subr.bf16.mxu0 0
      %1409 = vmatpush1.bf16.msra.mxu0 0
      %1410 = vmatprep.mubr.bf16.mxu0 0
      %1411 = vmatmul.mubr.bf16.gmra.mrb[0].mxu0 %v1370
      %v1412 = vpop.f32.mrb[0].mxu0
      %v1413 = vadd.f32 0.0, %v1412
      %v1414 = vpop.f32.mrb[0].mxu0
      %v1415 = vadd.f32 0.0, %v1414
      %v1416 = vpop.f32.mrb[0].mxu0
      %v1417 = vpop.f32.mrb[0].mxu0
      %1418 = vdwg.mxu0
      %v1419 = vrot.slane %v1123, 4
      %v1420 = vrot.slane %v1124, 4
      %v1421 = vrot.slane %v1135, 2
      %v1422 = vrot.slane %v1136, 2
      %v1423 = vrot.slane %v1159, 6
      %v1424 = vrot.slane %v1160, 6
      %v1425 = vrot.slane %v1107, 4
      %v1426 = vrot.slane %v1108, 4
      %v1427 = vrot.slane %v1171, 2
      %v1428 = vrot.slane %v1172, 2
      %v1429 = vrot.slane %v1195, 6
      %v1430 = vrot.slane %v1196, 6
      %v1431 = vrot.slane %v1207, 4
      %v1432 = vrot.slane %v1208, 4
      %v1435 = vsel %vm695, %v1419, %v1421
      %v1438 = vsel %vm695, %v1420, %v1422
      %v1440 = vsel %vm705, %v1435, %v1147
      %v1442 = vsel %vm705, %v1438, %v1148
      %v1444 = vsel %vm406, %v1440, %v1423
      %v1447 = vsel %vm406, %v1442, %v1424
      %v1451 = vsel %vm695, %v1425, %v1427
      %v1454 = vsel %vm695, %v1426, %v1428
      %v1456 = vsel %vm705, %v1451, %v1183
      %v1458 = vsel %vm705, %v1454, %v1184
      %v1460 = vsel %vm406, %v1456, %v1429
      %v1463 = vsel %vm406, %v1458, %v1430
      %s1465 = scalar_lea.vmem %s6, 4
      %v1466 = vld [vmem:[%s1465] sm:$0x3]
      %v1468 = vsel %vm1266, %v1466, 0
      %v1471 = vsel %vm695, %v1431, 0
      %v1474 = vsel %vm695, %v1432, 0
      %1476 = vmatprep.subr.bf16.mxu0 %v1447
      %1477 = vmatpush1.bf16.msra.mxu0 %v1444
      %1478 = vmatprep.subr.bf16.mxu0 %v1463
      %1479 = vmatpush1.bf16.msra.mxu0 %v1460
      %1480 = vmatprep.subr.bf16.mxu0 %v1474
      %1481 = vmatpush1.bf16.msra.mxu0 %v1471
      %1482 = vmatprep.subr.bf16.mxu0 0
      %1483 = vmatpush1.bf16.msra.mxu0 0
      %1484 = vmatprep.subr.bf16.mxu0 0
      %1485 = vmatpush1.bf16.msra.mxu0 0
      %1486 = vmatprep.subr.bf16.mxu0 0
      %1487 = vmatpush1.bf16.msra.mxu0 0
      %1488 = vmatprep.subr.bf16.mxu0 0
      %1489 = vmatpush1.bf16.msra.mxu0 0
      %1490 = vmatprep.subr.bf16.mxu0 0
      %1491 = vmatpush1.bf16.msra.mxu0 0
      %1492 = vmatprep.subr.bf16.mxu0 0
      %1493 = vmatpush1.bf16.msra.mxu0 0
      %1494 = vmatprep.subr.bf16.mxu0 0
      %1495 = vmatpush1.bf16.msra.mxu0 0
      %1496 = vmatprep.subr.bf16.mxu0 0
      %1497 = vmatpush1.bf16.msra.mxu0 0
      %1498 = vmatprep.subr.bf16.mxu0 0
      %1499 = vmatpush1.bf16.msra.mxu0 0
      %1500 = vmatprep.subr.bf16.mxu0 0
      %1501 = vmatpush1.bf16.msra.mxu0 0
      %1502 = vmatprep.subr.bf16.mxu0 0
      %1503 = vmatpush1.bf16.msra.mxu0 0
      %1504 = vmatprep.subr.bf16.mxu0 0
      %1505 = vmatpush1.bf16.msra.mxu0 0
      %1506 = vmatprep.subr.bf16.mxu0 0
      %1507 = vmatpush1.bf16.msra.mxu0 0
      %1508 = vmatprep.mubr.bf16.mxu0 0
      %1509 = vmatmul.mubr.bf16.gmra.mrb[0].mxu0 %v1468
      %v1510 = vpop.f32.mrb[0].mxu0
      %v1511 = vadd.f32 0.0, %v1510
      %v1512 = vpop.f32.mrb[0].mxu0
      %v1513 = vadd.f32 0.0, %v1512
      %v1514 = vpop.f32.mrb[0].mxu0
      %v1515 = vpop.f32.mrb[0].mxu0
      %1516 = vdwg.mxu0
      %v1519 = vrot.slane %v1413, 4
      %v1520 = vrot.slane %v1415, 4
      %v1523 = vsel %vm705, %v1311, %v1519
      %v1524 = vsel %vm705, %v1313, %v1520
      %1526 = vset.pattern.permute.xlu0 0
      %1527 = vperm.xlu0 %1526, %v1109
      %v1528 = vpop.permute.xlu0 %1527
      %1531 = vset.pattern.permute.xlu0 0
      %1532 = vperm.xlu0 %1531, %v1110
      %v1533 = vpop.permute.xlu0 %1532
      %v1535 = vadd.f32 %v1523, %v1528
      %v1536 = vadd.f32 %v1524, %v1528
      %v1537 = vadd.f32 %v1511, %v1533
      %v1538 = vadd.f32 %v1513, %v1533
      %v1539 = vpack.c.bf16 %v398, %v398
      %v1540 = vpack.c.bf16 %v399, %v399
      %v1541 = vld [vmem:[%s8] sm:$0x3]
      %vm1542 = vcmask 15360
      %v1544 = vsel %vm1542, %v1541, 0
      %v1547 = vsel %vm688, %v1539, 0
      %v1550 = vsel %vm688, %v1540, 0
      %1552 = vmatprep.subr.bf16.mxu0 %v1550
      %1553 = vmatpush1.bf16.msra.mxu0 %v1547
      %1554 = vmatprep.subr.bf16.mxu0 0
      %1555 = vmatpush1.bf16.msra.mxu0 0
      %1556 = vmatprep.subr.bf16.mxu0 0
      %1557 = vmatpush1.bf16.msra.mxu0 0
      %1558 = vmatprep.subr.bf16.mxu0 0
      %1559 = vmatpush1.bf16.msra.mxu0 0
      %1560 = vmatprep.subr.bf16.mxu0 0
      %1561 = vmatpush1.bf16.msra.mxu0 0
      %1562 = vmatprep.subr.bf16.mxu0 0
      %1563 = vmatpush1.bf16.msra.mxu0 0
      %1564 = vmatprep.subr.bf16.mxu0 0
      %1565 = vmatpush1.bf16.msra.mxu0 0
      %1566 = vmatprep.subr.bf16.mxu0 0
      %1567 = vmatpush1.bf16.msra.mxu0 0
      %1568 = vmatprep.subr.bf16.mxu0 0
      %1569 = vmatpush1.bf16.msra.mxu0 0
      %1570 = vmatprep.subr.bf16.mxu0 0
      %1571 = vmatpush1.bf16.msra.mxu0 0
      %1572 = vmatprep.subr.bf16.mxu0 0
      %1573 = vmatpush1.bf16.msra.mxu0 0
      %1574 = vmatprep.subr.bf16.mxu0 0
      %1575 = vmatpush1.bf16.msra.mxu0 0
      %1576 = vmatprep.subr.bf16.mxu0 0
      %1577 = vmatpush1.bf16.msra.mxu0 0
      %1578 = vmatprep.subr.bf16.mxu0 0
      %1579 = vmatpush1.bf16.msra.mxu0 0
      %1580 = vmatprep.subr.bf16.mxu0 0
      %1581 = vmatpush1.bf16.msra.mxu0 0
      %1582 = vmatprep.subr.bf16.mxu0 0
      %1583 = vmatpush1.bf16.msra.mxu0 0
      %1584 = vmatprep.mubr.bf16.mxu0 0
      %1585 = vmatmul.mubr.bf16.gmra.mrb[0].mxu0 %v1544
      %v1586 = vpop.f32.mrb[0].mxu0
      %v1587 = vadd.f32 0.0, %v1586
      %v1588 = vpop.f32.mrb[0].mxu0
      %v1589 = vadd.f32 0.0, %v1588
      %v1590 = vpop.f32.mrb[0].mxu0
      %v1591 = vpop.f32.mrb[0].mxu0
      %1592 = vdwg.mxu0
      %s1593 = scalar_lea.vmem %s8, 2
      %v1594 = vld [vmem:[%s1593] sm:$0x3]
      %v1597 = vrot.slane %v1539, 1
      %v1598 = vrot.slane %v1540, 1
      %v1600 = vsel %vm1542, %v1594, 0
      %v1603 = vsel %vm688, %v1597, 0
      %v1606 = vsel %vm688, %v1598, 0
      %1608 = vmatprep.subr.bf16.mxu0 %v1606
      %1609 = vmatpush1.bf16.msra.mxu0 %v1603
      %1610 = vmatprep.subr.bf16.mxu0 0
      %1611 = vmatpush1.bf16.msra.mxu0 0
      %1612 = vmatprep.subr.bf16.mxu0 0
      %1613 = vmatpush1.bf16.msra.mxu0 0
      %1614 = vmatprep.subr.bf16.mxu0 0
      %1615 = vmatpush1.bf16.msra.mxu0 0
      %1616 = vmatprep.subr.bf16.mxu0 0
      %1617 = vmatpush1.bf16.msra.mxu0 0
      %1618 = vmatprep.subr.bf16.mxu0 0
      %1619 = vmatpush1.bf16.msra.mxu0 0
      %1620 = vmatprep.subr.bf16.mxu0 0
      %1621 = vmatpush1.bf16.msra.mxu0 0
      %1622 = vmatprep.subr.bf16.mxu0 0
      %1623 = vmatpush1.bf16.msra.mxu0 0
      %1624 = vmatprep.subr.bf16.mxu0 0
      %1625 = vmatpush1.bf16.msra.mxu0 0
      %1626 = vmatprep.subr.bf16.mxu0 0
      %1627 = vmatpush1.bf16.msra.mxu0 0
      %1628 = vmatprep.subr.bf16.mxu0 0
      %1629 = vmatpush1.bf16.msra.mxu0 0
      %1630 = vmatprep.subr.bf16.mxu0 0
      %1631 = vmatpush1.bf16.msra.mxu0 0
      %1632 = vmatprep.subr.bf16.mxu0 0
      %1633 = vmatpush1.bf16.msra.mxu0 0
      %1634 = vmatprep.subr.bf16.mxu0 0
      %1635 = vmatpush1.bf16.msra.mxu0 0
      %1636 = vmatprep.subr.bf16.mxu0 0
      %1637 = vmatpush1.bf16.msra.mxu0 0
      %1638 = vmatprep.subr.bf16.mxu0 0
      %1639 = vmatpush1.bf16.msra.mxu0 0
      %1640 = vmatprep.mubr.bf16.mxu0 0
      %1641 = vmatmul.mubr.bf16.gmra.mrb[0].mxu0 %v1600
      %v1642 = vpop.f32.mrb[0].mxu0
      %v1643 = vadd.f32 0.0, %v1642
      %v1644 = vpop.f32.mrb[0].mxu0
      %v1645 = vadd.f32 0.0, %v1644
      %v1646 = vpop.f32.mrb[0].mxu0
      %v1647 = vpop.f32.mrb[0].mxu0
      %1648 = vdwg.mxu0
      %s1649 = scalar_lea.vmem %s8, 4
      %v1650 = vld [vmem:[%s1649] sm:$0x3]
      %v1651 = vrot.slane %v1539, 2
      %v1652 = vrot.slane %v1540, 2
      %v1654 = vsel %vm1542, %v1650, 0
      %v1657 = vsel %vm688, %v1651, 0
      %v1660 = vsel %vm688, %v1652, 0
      %1662 = vmatprep.subr.bf16.mxu0 %v1660
      %1663 = vmatpush1.bf16.msra.mxu0 %v1657
      %1664 = vmatprep.subr.bf16.mxu0 0
      %1665 = vmatpush1.bf16.msra.mxu0 0
      %1666 = vmatprep.subr.bf16.mxu0 0
      %1667 = vmatpush1.bf16.msra.mxu0 0
      %1668 = vmatprep.subr.bf16.mxu0 0
      %1669 = vmatpush1.bf16.msra.mxu0 0
      %1670 = vmatprep.subr.bf16.mxu0 0
      %1671 = vmatpush1.bf16.msra.mxu0 0
      %1672 = vmatprep.subr.bf16.mxu0 0
      %1673 = vmatpush1.bf16.msra.mxu0 0
      %1674 = vmatprep.subr.bf16.mxu0 0
      %1675 = vmatpush1.bf16.msra.mxu0 0
      %1676 = vmatprep.subr.bf16.mxu0 0
      %1677 = vmatpush1.bf16.msra.mxu0 0
      %1678 = vmatprep.subr.bf16.mxu0 0
      %1679 = vmatpush1.bf16.msra.mxu0 0
      %1680 = vmatprep.subr.bf16.mxu0 0
      %1681 = vmatpush1.bf16.msra.mxu0 0
      %1682 = vmatprep.subr.bf16.mxu0 0
      %1683 = vmatpush1.bf16.msra.mxu0 0
      %1684 = vmatprep.subr.bf16.mxu0 0
      %1685 = vmatpush1.bf16.msra.mxu0 0
      %1686 = vmatprep.subr.bf16.mxu0 0
      %1687 = vmatpush1.bf16.msra.mxu0 0
      %1688 = vmatprep.subr.bf16.mxu0 0
      %1689 = vmatpush1.bf16.msra.mxu0 0
      %1690 = vmatprep.subr.bf16.mxu0 0
      %1691 = vmatpush1.bf16.msra.mxu0 0
      %1692 = vmatprep.subr.bf16.mxu0 0
      %1693 = vmatpush1.bf16.msra.mxu0 0
      %1694 = vmatprep.mubr.bf16.mxu0 0
      %1695 = vmatmul.mubr.bf16.gmra.mrb[0].mxu0 %v1654
      %v1696 = vpop.f32.mrb[0].mxu0
      %v1697 = vadd.f32 0.0, %v1696
      %v1698 = vpop.f32.mrb[0].mxu0
      %v1699 = vadd.f32 0.0, %v1698
      %v1700 = vpop.f32.mrb[0].mxu0
      %v1701 = vpop.f32.mrb[0].mxu0
      %1702 = vdwg.mxu0
      %v1705 = vrot.slane %v1643, 4
      %v1706 = vrot.slane %v1645, 4
      %v1709 = vsel %vm705, %v1587, %v1705
      %v1710 = vsel %vm705, %v1589, %v1706
      %v1711 = vld [vmem:[%s9] sm:$0xff]
      %v1712 = vld [vmem:[%s9 + $0x8] sm:$0xf]
      %1714 = vset.pattern.permute.xlu0 0
      %1715 = vperm.xlu0 %1714, %v1711
      %v1716 = vpop.permute.xlu0 %1715
      %1719 = vset.pattern.permute.xlu0 0
      %1720 = vperm.xlu0 %1719, %v1712
      %v1721 = vpop.permute.xlu0 %1720
      %v1723 = vadd.f32 %v1709, %v1716
      %v1724 = vadd.f32 %v1710, %v1716
      %v1725 = vadd.f32 %v1697, %v1721
      %v1726 = vadd.f32 %v1699, %v1721
      %v1727 = vadd.f32 %v1535, %v1723
      %v1728 = vadd.f32 %v1536, %v1724
      %v1729 = vadd.f32 %v1537, %v1725
      %v1730 = vadd.f32 %v1538, %v1726
      %1731 = vst [vmem:[%s396] sm:$0xff] %v1727
      %1732 = vst [vmem:[%s396 + $0x8] sm:$0xff] %v1728
      %1733 = vst [vmem:[%s396 + $0x10] sm:$0xf] %v1729
      %1734 = vst [vmem:[%s396 + $0x18] sm:$0xf] %v1730
      %p1735 = scmp.lt.s32.totalorder %s21, 1
      %s1736 = scalar_select %p1735, %s21, 1
      %s1737 = smul.addr %s1736, 4
      %s1738 = smul.addr %s1737, 8
      %s1739 = scalar_lea.vmem %s10, %s1738
      // Predicated region
      $region61: #{tpu_custom_call.1} parent=59 // pred_check
        %p1740 = pneg %p264
      $region62: #{tpu_custom_call.1} parent=59 // pred_check_branch
        %1742 = sbr.rel (%p1740) target = $region64
      $region63: #{tpu_custom_call.1} parent=59 // pred_region
        _
      $region64: #{tpu_custom_call.1} parent=59 // pred_fallthru
        _
    $region60: #{tpu_custom_call.1} parent=5 // pred_fallthru
      _
    %p1743 = scmp.le.s32.totalorder 2, %s16
    // Predicated region
    $region65: #{tpu_custom_call.1} parent=5 // pred_check
      %p1744 = pneg %p1743
    $region66: #{tpu_custom_call.1} parent=5 // pred_check_branch
      %1746 = sbr.rel (%p1744) target = $region68
    $region67: #{tpu_custom_call.1} parent=5 // pred_region
      %s1747 = ssub.s32 %s16, 2
      // Predicated region
      $region69: #{tpu_custom_call.1} parent=67 // pred_check
        %p1748 = pneg %p270
      $region70: #{tpu_custom_call.1} parent=67 // pred_check_branch
        %1750 = sbr.rel (%p1748) target = $region72
      $region71: #{tpu_custom_call.1} parent=67 // pred_region
        %p1751 = scmp.lt.s32.totalorder %s22, 1
        %s1752 = scalar_select %p1751, %s22, 1
        %s1753 = smul.addr %s1752, 4
        %s1754 = smul.addr %s1753, 8
        %s1755 = scalar_lea.vmem %s10, %s1754
      $region72: #{tpu_custom_call.1} parent=67 // pred_fallthru
        _
    $region68: #{tpu_custom_call.1} parent=5 // pred_fallthru
      _
  $region6: #{tpu_custom_call.1} parent=0 // loop_footer
    %s20 = sadd.s32 1, %s16
  $region7: #{tpu_custom_call.1} parent=0 // loop_footer_branch
    %15 = sbr.rel target = $region3
  $region8: #{tpu_custom_call.1} parent=0 // loop_exit
    _

</llo_original>
